<compile_context>
chip_gen: v7x
topology: tpu7x:2x2x1
jax: 0.10.0
libtpu: 0.0.40
codegen_flags: <defaults>
</compile_context>

<pallas_src>
import jax
import jax.numpy as jnp
from jax.experimental import pallas as pl
from jax.experimental.pallas import tpu as pltpu


# ----------------------------------------------------------------------------
# DDPM schedules (direct port of ddpm_schedules from the PyTorch module).
# ----------------------------------------------------------------------------
def ddpm_schedules(beta1, beta2, T):
    assert beta1 < beta2 < 1.0, "beta1 and beta2 must be in (0, 1)"
    beta_t = (beta2 - beta1) * jnp.arange(0, T + 1, dtype=jnp.float32) / T + beta1
    sqrt_beta_t = jnp.sqrt(beta_t)
    alpha_t = 1.0 - beta_t
    log_alpha_t = jnp.log(alpha_t)
    alphabar_t = jnp.exp(jnp.cumsum(log_alpha_t, axis=0))
    sqrtab = jnp.sqrt(alphabar_t)
    oneover_sqrta = 1.0 / jnp.sqrt(alpha_t)
    sqrtmab = jnp.sqrt(1.0 - alphabar_t)
    mab_over_sqrtmab_inv = (1.0 - alpha_t) / sqrtmab
    return {
        "alpha_t": alpha_t,
        "log_alpha_t": log_alpha_t,
        "oneover_sqrta": oneover_sqrta,
        "sqrt_beta_t": sqrt_beta_t,
        "alphabar_t": alphabar_t,
        "sqrtab": sqrtab,
        "sqrtmab": sqrtmab,
        "mab_over_sqrtmab": mab_over_sqrtmab_inv,
    }


def _round_up(n, m):
    return ((n + m - 1) // m) * m


def _largest_aligned_divisor(n, cap, align=128):
    """Largest multiple of `align` that divides `n`, capped at `cap`.

    `n` must already be a multiple of `align`, so this never degrades to a
    full-extent (n, n) block the way the old `if D % tk: tk = D` fallback did.
    """
    t = max(align, (min(cap, n) // align) * align)
    while t > align:
        if n % t == 0:
            return t
        t -= align
    return align


# ----------------------------------------------------------------------------
# Pallas kernel.
# Grid = (nj, kt):
#   axis 0 (parallel)  -> N tile of the eps-predictor output (v7x megacore)
#   axis 1 (arbitrary) -> K tile of the contraction (accumulated in VMEM)
# ----------------------------------------------------------------------------
def ddpm_loss_kernel(
    scal_ref,   # (Bp, 8)  packed per-batch scalars [sqrtab, sqrtmab, t/n_T, cmask, 0..]
    x_ref,      # (Bp, Dp) flattened clean image, resident (K-sliced in kernel)
    noise_ref,  # (Bp, Dp) gaussian noise, resident (K-sliced for x_t, N-sliced for MSE)
    w_ref,      # (tk, tn) bf16 eps-predictor weight slice (the streamed operand)
    temb_ref,   # (1, tn)  time-embedding N slice
    cemb_ref,   # (Bp, tn) class-embedding N slice
    o_ref,      # (8, 128) per-N-tile partial sum-of-squares block
    acc_ref,    # (Bp, tn) f32 VMEM accumulator
):
    j = pl.program_id(0)
    k = pl.program_id(1)
    tk, tn = w_ref.shape

    @pl.when(k == 0)
    def _init():
        acc_ref[...] = jnp.zeros_like(acc_ref)

    # forward diffusion on this K-slice: x_t = sqrtab[t] * x + sqrtmab[t] * noise
    sab = scal_ref[:, 0:1]
    smab = scal_ref[:, 1:2]
    k_off = pl.multiple_of(k * tk, 128)
    x_t = sab * x_ref[:, pl.ds(k_off, tk)] + smab * noise_ref[:, pl.ds(k_off, tk)]

    # synthetic nn_model matmul slice: bf16 x bf16 with f32 MXU accumulation
    acc_ref[...] += jnp.dot(
        x_t.astype(jnp.bfloat16), w_ref[...], preferred_element_type=jnp.float32
    )

    @pl.when(k == pl.num_programs(1) - 1)
    def _finalize():
        # eps_pred = x_t @ W + (t/n_T) * t_emb + (1 - context_mask) * class_emb
        tfrac = scal_ref[:, 2:3]
        cmask = scal_ref[:, 3:4]
        eps_pred = (
            acc_ref[...]
            + tfrac * temb_ref[...]
            + (1.0 - cmask) * cemb_ref[...]
        )
        n_off = pl.multiple_of(j * tn, 128)
        diff = noise_ref[:, pl.ds(n_off, tn)] - eps_pred
        psum = jnp.sum(diff * diff)
        # Spread psum/1024 over the aligned (8,128) output block (unmasked
        # lane-dense store); the wrapper recovers sum_j psum_j with jnp.sum.
        o_ref[...] = (psum * (1.0 / 1024.0)) * jnp.ones((8, 128), jnp.float32)


# ----------------------------------------------------------------------------
# Host-side wrappers.
# ----------------------------------------------------------------------------
def draw_forward_randoms(key, x, c, n_T, drop_prob):
    """The three random draws DDPM.forward makes: _ts, noise, context_mask."""
    k_ts, k_noise, k_mask = jax.random.split(key, 3)
    ts = jax.random.randint(k_ts, (x.shape[0],), 1, n_T + 1)
    noise = jax.random.normal(k_noise, x.shape, dtype=jnp.float32)
    cmask = jax.random.bernoulli(k_mask, drop_prob, c.shape).astype(jnp.float32)
    return ts, noise, cmask


def ddpm_loss_pallas(x, c, ts, noise, cmask, params, schedules, n_T,
                     *, max_tk=512, min_batch_pad=8):
    """Deterministic MSE loss given the random draws (Pallas kernel path)."""
    B, C, H, W = x.shape
    D = C * H * W

    # --- padding: M (batch) to full sublanes, K/N (features) to lane multiples
    Bp = max(min_batch_pad, _round_up(B, 8))
    Dp = _round_up(D, 128)

    tk = _largest_aligned_divisor(Dp, max_tk)   # guarded: never collapses to Dp unless Dp<=max_tk
    kt = Dp // tk
    nj = 2 if Dp % 256 == 0 else 1              # split N across v7x's two TensorCores
    tn = Dp // nj

    # --- packed per-batch diffusion scalars (one small VMEM tile) ------------
    # Padded rows: sab=smab=tfrac=0 and cmask=1 so they contribute exactly 0.
    scal = jnp.zeros((Bp, 8), jnp.float32)
    scal = scal.at[:, 3].set(1.0)
    scal = scal.at[:B, 0].set(schedules["sqrtab"][ts])
    scal = scal.at[:B, 1].set(schedules["sqrtmab"][ts])
    scal = scal.at[:B, 2].set(ts.astype(jnp.float32) / float(n_T))
    scal = scal.at[:B, 3].set(cmask.reshape(B))

    # --- zero-padded dense operands ------------------------------------------
    x_flat = jnp.zeros((Bp, Dp), jnp.float32).at[:B, :D].set(x.reshape(B, D))
    noise_flat = jnp.zeros((Bp, Dp), jnp.float32).at[:B, :D].set(noise.reshape(B, D))

    w = params["w"]  # bf16 (D, D)
    if w.shape != (Dp, Dp):
        w = jnp.zeros((Dp, Dp), jnp.bfloat16).at[:D, :D].set(w)
    t_emb = jnp.zeros((1, Dp), jnp.float32).at[:, :D].set(params["t_emb"])
    cemb = jnp.zeros((Bp, Dp), jnp.float32).at[:B, :D].set(params["class_emb"][c])

    cost = pl.CostEstimate(
        flops=2 * Bp * Dp * Dp,
        transcendentals=0,
        bytes_accessed=Dp * Dp * 2 + 3 * Bp * Dp * 4 + Dp * 4,
    )

    out = pl.pallas_call(
        ddpm_loss_kernel,
        out_shape=jax.ShapeDtypeStruct((8, nj * 128), jnp.float32),
        grid=(nj, kt),
        in_specs=[
            pl.BlockSpec((Bp, 8),  lambda j, k: (0, 0)),   # packed scalars (resident)
            pl.BlockSpec((Bp, Dp), lambda j, k: (0, 0)),   # x (resident, K-sliced in kernel)
            pl.BlockSpec((Bp, Dp), lambda j, k: (0, 0)),   # noise (resident, K+N sliced)
            pl.BlockSpec((tk, tn), lambda j, k: (k, j)),   # bf16 W slice (the hot stream)
            pl.BlockSpec((1, tn),  lambda j, k: (0, j)),   # time embedding N slice
            pl.BlockSpec((Bp, tn), lambda j, k: (0, j)),   # class embedding N slice
        ],
        out_specs=pl.BlockSpec((8, 128), lambda j, k: (0, j)),
        scratch_shapes=[pltpu.VMEM((Bp, tn), jnp.float32)],
        compiler_params=pltpu.CompilerParams(
            dimension_semantics=("parallel", "arbitrary"),
            vmem_limit_bytes=32 * 1024 * 1024,
        ),
        cost_estimate=cost,
    )(scal, x_flat, noise_flat, w, t_emb, cemb)

    # sum of per-N-tile partial SSEs, normalized by the REAL element count
    return jnp.sum(out) * (1.0 / float(B * D))


def ddpm_forward(x, c, params, schedules, key, n_T, drop_prob):
    """Matches DDPM.forward semantics: draw (_ts, noise, mask), return MSE loss."""
    ts, noise, cmask = draw_forward_randoms(key, x, c, n_T, drop_prob)
    return ddpm_loss_pallas(x, c, ts, noise, cmask, params, schedules, n_T)


def ddpm_loss_ref(x, c, ts, noise, cmask, params, schedules, n_T):
    """Pure-f32 jnp reference of the same forward (tolerance check only)."""
    B = x.shape[0]
    D = x[0].size
    sab = schedules["sqrtab"][ts].reshape(B, 1, 1, 1)
    smab = schedules["sqrtmab"][ts].reshape(B, 1, 1, 1)
    x_t = (sab * x + smab * noise).reshape(B, D)
    eps = (
        x_t @ params["w"].astype(jnp.float32)
        + (ts.astype(jnp.float32) / float(n_T)).reshape(B, 1) * params["t_emb"]
        + (1.0 - cmask).reshape(B, 1) * params["class_emb"][c]
    )
    diff = noise.reshape(B, D) - eps
    return jnp.mean(diff * diff)


# ----------------------------------------------------------------------------
# Deterministic synthetic parameters for the eps-prediction model.
# ----------------------------------------------------------------------------
def init_params(D, n_classes, key):
    kw, kt, kc = jax.random.split(key, 3)
    return {
        # bf16 weights: halves the dominant HBM fetch, native MXU dtype.
        "w": (jax.random.normal(kw, (D, D), jnp.float32)
              * (1.0 / jnp.sqrt(D))).astype(jnp.bfloat16),
        "t_emb": jax.random.normal(kt, (1, D), jnp.float32) * 0.02,
        "class_emb": jax.random.normal(kc, (n_classes, D), jnp.float32) * 0.02,
    }


if __name__ == "__main__":
    # Small, CIFAR-like shapes: batch=2, channels=4, spatial=16x16.
    B, C, H, W = 2, 4, 16, 16
    D = C * H * W
    n_T = 400
    n_classes = 10
    drop_prob = 0.1
    betas = (1e-4, 0.02)

    root = jax.random.PRNGKey(0)
    k_x, k_c, k_p, k_fwd = jax.random.split(root, 4)

    x = jax.random.normal(k_x, (B, C, H, W), jnp.float32)
    c = jax.random.randint(k_c, (B,), 0, n_classes)

    params = init_params(D, n_classes, k_p)
    schedules = ddpm_schedules(betas[0], betas[1], n_T)

    ts, noise, cmask = draw_forward_randoms(k_fwd, x, c, n_T, drop_prob)

    loss = ddpm_loss_pallas(x, c, ts, noise, cmask, params, schedules, n_T)
    loss = jax.block_until_ready(loss)

    loss_ref = ddpm_loss_ref(x, c, ts, noise, cmask, params, schedules, n_T)

    assert jnp.isfinite(loss), loss
    # bf16 matmul vs f32 reference -> loose tolerance
    assert jnp.allclose(loss, loss_ref, rtol=5e-2, atol=1e-3), (loss, loss_ref)
    print("KERNEL_OK")
</pallas_src>

<mosaic_0001>
module attributes {stable_mosaic.version = 11 : i64} {
  func.func @ddpm_loss_kernel(%arg0: i32, %arg1: i32, %arg2: memref<8x8xf32, #tpu.memory_space<vmem>>, %arg3: memref<8x1024xf32, #tpu.memory_space<vmem>>, %arg4: memref<8x1024xf32, #tpu.memory_space<vmem>>, %arg5: memref<512x512xbf16, #tpu.memory_space<vmem>>, %arg6: memref<1x512xf32, #tpu.memory_space<vmem>>, %arg7: memref<8x512xf32, #tpu.memory_space<vmem>>, %arg8: memref<8x128xf32, #tpu.memory_space<vmem>>, %arg9: memref<8x512xf32, #tpu.memory_space<vmem>>) attributes {dimension_semantics = [#tpu.dimension_semantics<parallel>, #tpu.dimension_semantics<arbitrary>], iteration_bounds = array<i64: 2, 2>, scalar_prefetch = 0 : i64, scratch_operands = 1 : i64, tpu.core_type = #tpu.core_type<tc>, window_params = [{pipeline_mode = #tpu.pipeline_mode<synchronous>, transform_indices = @transform_0, window_bounds = array<i64: 8, 8>}, {pipeline_mode = #tpu.pipeline_mode<synchronous>, transform_indices = @transform_1, window_bounds = array<i64: 8, 1024>}, {pipeline_mode = #tpu.pipeline_mode<synchronous>, transform_indices = @transform_2, window_bounds = array<i64: 8, 1024>}, {transform_indices = @transform_3, window_bounds = array<i64: 512, 512>}, {transform_indices = @transform_4, window_bounds = array<i64: 1, 512>}, {transform_indices = @transform_5, window_bounds = array<i64: 8, 512>}, {transform_indices = @transform_6, window_bounds = array<i64: 8, 128>}]} {
    %c0_i32 = arith.constant 0 : i32
    %0 = arith.cmpi eq, %arg1, %c0_i32 : i32
    %1 = arith.extui %0 : i1 to i32
    %c0_i32_0 = arith.constant 0 : i32
    %2 = arith.cmpi ne, %1, %c0_i32_0 : i32
    scf.if %2 {
      %cst_12 = arith.constant 0.000000e+00 : f32
      %25 = vector.broadcast %cst_12 : f32 to vector<8x512xf32>
      %c0_13 = arith.constant 0 : index
      %c0_14 = arith.constant 0 : index
      %26 = vector.load %arg9[%c0_13, %c0_14] : memref<8x512xf32, #tpu.memory_space<vmem>>, vector<8x512xf32>
      tpu.vector_store %arg9[%c0_13, %c0_14], %25 {strides = array<i32>} : memref<8x512xf32, #tpu.memory_space<vmem>>, vector<8x512xf32>,
    } else {
    }
    %c0 = arith.constant 0 : index
    %c0_1 = arith.constant 0 : index
    %3 = vector.load %arg2[%c0, %c0_1] : memref<8x8xf32, #tpu.memory_space<vmem>>, vector<8x1xf32>
    %c0_2 = arith.constant 0 : index
    %c1 = arith.constant 1 : index
    %4 = vector.load %arg2[%c0_2, %c1] : memref<8x8xf32, #tpu.memory_space<vmem>>, vector<8x1xf32>
    %c512_i32 = arith.constant 512 : i32
    %5 = arith.muli %arg1, %c512_i32 : i32
    %6 = tpu.assume_multiple %5, 128 : i32
    %c0_3 = arith.constant 0 : index
    %7 = arith.index_cast %6 : i32 to index
    %8 = vector.load %arg3[%c0_3, %7] : memref<8x1024xf32, #tpu.memory_space<vmem>>, vector<8x512xf32>
    %9 = vector.broadcast %3 : vector<8x1xf32> to vector<8x512xf32>
    %10 = arith.mulf %9, %8 : vector<8x512xf32>
    %c0_4 = arith.constant 0 : index
    %11 = arith.index_cast %6 : i32 to index
    %12 = vector.load %arg4[%c0_4, %11] : memref<8x1024xf32, #tpu.memory_space<vmem>>, vector<8x512xf32>
    %13 = vector.broadcast %4 : vector<8x1xf32> to vector<8x512xf32>
    %14 = arith.mulf %13, %12 : vector<8x512xf32>
    %15 = arith.addf %10, %14 : vector<8x512xf32>
    %c0_5 = arith.constant 0 : index
    %c0_6 = arith.constant 0 : index
    %16 = vector.load %arg9[%c0_5, %c0_6] : memref<8x512xf32, #tpu.memory_space<vmem>>, vector<8x512xf32>
    %17 = arith.truncf %15 : vector<8x512xf32> to vector<8x512xbf16>
    %c0_7 = arith.constant 0 : index
    %c0_8 = arith.constant 0 : index
    %18 = vector.load %arg5[%c0_7, %c0_8] : memref<512x512xbf16, #tpu.memory_space<vmem>>, vector<512x512xbf16>
    %cst = arith.constant dense<0.000000e+00> : vector<8x512xf32>
    %19 = tpu.matmul %17, %18, %cst {dimension_numbers = #tpu.dot_dimension_numbers<[1], [0], [0], [1], [0, 0, 1, 1], [], []>} : vector<8x512xbf16>, vector<512x512xbf16>, vector<8x512xf32> -> vector<8x512xf32>
    %20 = arith.addf %16, %19 : vector<8x512xf32>
    %c0_9 = arith.constant 0 : index
    %c0_10 = arith.constant 0 : index
    %21 = vector.load %arg9[%c0_9, %c0_10] : memref<8x512xf32, #tpu.memory_space<vmem>>, vector<8x512xf32>
    tpu.vector_store %arg9[%c0_9, %c0_10], %20 {strides = array<i32>} : memref<8x512xf32, #tpu.memory_space<vmem>>, vector<8x512xf32>,
    %c1_i32 = arith.constant 1 : i32
    %22 = arith.cmpi eq, %arg1, %c1_i32 : i32
    %23 = arith.extui %22 : i1 to i32
    %c0_i32_11 = arith.constant 0 : i32
    %24 = arith.cmpi ne, %23, %c0_i32_11 : i32
    scf.if %24 {
      %c0_12 = arith.constant 0 : index
      %c2 = arith.constant 2 : index
      %25 = vector.load %arg2[%c0_12, %c2] : memref<8x8xf32, #tpu.memory_space<vmem>>, vector<8x1xf32>
      %c0_13 = arith.constant 0 : index
      %c3 = arith.constant 3 : index
      %26 = vector.load %arg2[%c0_13, %c3] : memref<8x8xf32, #tpu.memory_space<vmem>>, vector<8x1xf32>
      %c0_14 = arith.constant 0 : index
      %c0_15 = arith.constant 0 : index
      %27 = vector.load %arg9[%c0_14, %c0_15] : memref<8x512xf32, #tpu.memory_space<vmem>>, vector<8x512xf32>
      %c0_16 = arith.constant 0 : index
      %c0_17 = arith.constant 0 : index
      %28 = vector.load %arg6[%c0_16, %c0_17] : memref<1x512xf32, #tpu.memory_space<vmem>>, vector<1x512xf32>
      %29 = vector.broadcast %25 : vector<8x1xf32> to vector<8x512xf32>
      %30 = vector.broadcast %28 : vector<1x512xf32> to vector<8x512xf32>
      %31 = arith.mulf %29, %30 : vector<8x512xf32>
      %32 = arith.addf %27, %31 : vector<8x512xf32>
      %cst_18 = arith.constant 1.000000e+00 : f32
      %33 = vector.broadcast %cst_18 : f32 to vector<8x1xf32>
      %34 = arith.subf %33, %26 : vector<8x1xf32>
      %c0_19 = arith.constant 0 : index
      %c0_20 = arith.constant 0 : index
      %35 = vector.load %arg7[%c0_19, %c0_20] : memref<8x512xf32, #tpu.memory_space<vmem>>, vector<8x512xf32>
      %36 = vector.broadcast %34 : vector<8x1xf32> to vector<8x512xf32>
      %37 = arith.mulf %36, %35 : vector<8x512xf32>
      %38 = arith.addf %32, %37 : vector<8x512xf32>
      %c512_i32_21 = arith.constant 512 : i32
      %39 = arith.muli %arg0, %c512_i32_21 : i32
      %40 = tpu.assume_multiple %39, 128 : i32
      %c0_22 = arith.constant 0 : index
      %41 = arith.index_cast %40 : i32 to index
      %42 = vector.load %arg4[%c0_22, %41] : memref<8x1024xf32, #tpu.memory_space<vmem>>, vector<8x512xf32>
      %43 = arith.subf %42, %38 : vector<8x512xf32>
      %44 = arith.mulf %43, %43 : vector<8x512xf32>
      %45 = vector.shape_cast %44 : vector<8x512xf32> to vector<1x8x512xf32>
      %cst_23 = arith.constant dense<0.000000e+00> : vector<1xf32>
      %46 = vector.multi_reduction <add>, %45, %cst_23 [1, 2] : vector<1x8x512xf32> to vector<1xf32>
      %47 = vector.shape_cast %46 : vector<1xf32> to vector<1x1x1xf32>
      %48 = vector.extract %47[0, 0, 0] : f32 from vector<1x1x1xf32>
      %cst_24 = arith.constant 9.765625E-4 : f32
      %49 = arith.mulf %48, %cst_24 : f32
      %cst_25 = arith.constant 1.000000e+00 : f32
      %50 = vector.broadcast %cst_25 : f32 to vector<8x128xf32>
      %51 = vector.broadcast %49 : f32 to vector<8x128xf32>
      %52 = arith.mulf %51, %50 : vector<8x128xf32>
      %c0_26 = arith.constant 0 : index
      %c0_27 = arith.constant 0 : index
      %53 = vector.load %arg8[%c0_26, %c0_27] : memref<8x128xf32, #tpu.memory_space<vmem>>, vector<8x128xf32>
      tpu.vector_store %arg8[%c0_26, %c0_27], %52 {strides = array<i32>} : memref<8x128xf32, #tpu.memory_space<vmem>>, vector<8x128xf32>,
    } else {
    }
    return
  }
  func.func @transform_0(%arg0: i32, %arg1: i32) -> (i32, i32) {
    %c0_i32 = arith.constant 0 : i32
    %c0_i32_0 = arith.constant 0 : i32
    %c0_i32_1 = arith.constant 0 : i32
    return %c0_i32, %c0_i32_0 : i32, i32
  }
  func.func @transform_1(%arg0: i32, %arg1: i32) -> (i32, i32) {
    %c0_i32 = arith.constant 0 : i32
    %c0_i32_0 = arith.constant 0 : i32
    %c0_i32_1 = arith.constant 0 : i32
    return %c0_i32, %c0_i32_0 : i32, i32
  }
  func.func @transform_2(%arg0: i32, %arg1: i32) -> (i32, i32) {
    %c0_i32 = arith.constant 0 : i32
    %c0_i32_0 = arith.constant 0 : i32
    %c0_i32_1 = arith.constant 0 : i32
    return %c0_i32, %c0_i32_0 : i32, i32
  }
  func.func @transform_3(%arg0: i32, %arg1: i32) -> (i32, i32) {
    %c0_i32 = arith.constant 0 : i32
    return %arg1, %arg0 : i32, i32
  }
  func.func @transform_4(%arg0: i32, %arg1: i32) -> (i32, i32) {
    %c0_i32 = arith.constant 0 : i32
    %c0_i32_0 = arith.constant 0 : i32
    return %c0_i32, %arg0 : i32, i32
  }
  func.func @transform_5(%arg0: i32, %arg1: i32) -> (i32, i32) {
    %c0_i32 = arith.constant 0 : i32
    %c0_i32_0 = arith.constant 0 : i32
    return %c0_i32, %arg0 : i32, i32
  }
  func.func @transform_6(%arg0: i32, %arg1: i32) -> (i32, i32) {
    %c0_i32 = arith.constant 0 : i32
    %c0_i32_0 = arith.constant 0 : i32
    return %c0_i32, %arg0 : i32, i32
  }
}

</mosaic_0001>

<llo_original>
// kernel: tpu_custom_call.1
$region0: #{tpu_custom_call.1}
  #allocation0 [shape = 'u32[]', space=smem, size = 0x4, offset = 0x4, fixed_abs, tag = 'smem constant byte address 0x4 - core index']
  #allocation1 [shape = 'u32[144,128]{1,0:T(1,128)}', space=vmem, size = 0x12000, scoped, tag = 'internal scratch']
  #allocation2 [shape = 'f32[8,512]{1,0:T(8,128)}', space=vmem, size = 0x4000, scoped, tag = 'scratch operand']
  %s0 = inlined_call_operand.hbm [shape: f32[8,8], index: 0, kind: input, shape index: {}]
  %s1 = inlined_call_operand.hbm [shape: f32[8,1024], index: 1, kind: input, shape index: {}]
  %s2 = inlined_call_operand.hbm [shape: f32[8,1024], index: 2, kind: input, shape index: {}]
  %s3 = inlined_call_operand.hbm [shape: bf16[1024,1024], index: 3, kind: input, shape index: {}]
  %s4 = inlined_call_operand.hbm [shape: f32[1,1024], index: 4, kind: input, shape index: {}]
  %s5 = inlined_call_operand.hbm [shape: f32[8,1024], index: 5, kind: input, shape index: {}]
  %s6 = inlined_call_operand.hbm [shape: f32[8,256], index: 6, kind: output, shape index: {}]
  %s7 = sld [smem:[#allocation0]]
  $region89: #{tpu_custom_call.1} parent=0
    _
  %s9 = ssub.s32 1, %s7
  %s10 = scalar_select 0, %s9, %s7
  $region1: #{tpu_custom_call.1} parent=0
    #allocation3 [shape = 'u8[4096]{0}', space=vmem, size = 0x1000, scoped, tag = 'input window, operand 0, single buffered']
    #allocation4 [shape = 's32[2]{0}', space=sflag, size = 0x8, scoped, tag = 'scoped memory for tpu_custom_call.1']
    #allocation5 [shape = 's32[2]{0}', space=sflag, size = 0x8, scoped, tag = 'scoped memory for tpu_custom_call.1']
    #allocation6 [shape = 'u8[32768]{0}', space=vmem, size = 0x8000, scoped, tag = 'input window, operand 1, single buffered']
    #allocation7 [shape = 's32[1]{0}', space=sflag, size = 0x4, scoped, tag = 'scoped memory for tpu_custom_call.1']
    #allocation8 [shape = 'u8[32768]{0}', space=vmem, size = 0x8000, scoped, tag = 'input window, operand 2, single buffered']
    #allocation9 [shape = 'u8[1048576]{0}', space=vmem, size = 0x100000, scoped, tag = 'input window, operand 3']
    #allocation10 [shape = 's32[2]{0}', space=sflag, size = 0x8, scoped, tag = 'scoped memory for tpu_custom_call.1']
    #allocation11 [shape = 'u8[4096]{0}', space=vmem, size = 0x1000, scoped, tag = 'input window, operand 4']
    #allocation12 [shape = 'u8[32768]{0}', space=vmem, size = 0x8000, scoped, tag = 'input window, operand 5']
    #allocation13 [shape = 's32[2]{0}', space=sflag, size = 0x8, scoped, tag = 'scoped memory for tpu_custom_call.1']
    #allocation14 [shape = 'u8[8192]{0}', space=vmem, size = 0x2000, scoped, tag = 'output window, operand 0']
    %11 = vsyncpa [#allocation4], 0
    %12 = vsyncpa [#allocation7], 0
    %13 = vsyncpa [#allocation10], 0
    %s14 = scalar_lea.sflag [#allocation10], 1
    %15 = vsyncpa %s14, 0
    %16 = vsyncpa [#allocation13], 0
    %s17 = scalar_lea.sflag [#allocation13], 1
    %18 = vsyncpa %s17, 0
    %19 = vsyncpa [#allocation5], 0
    %s20 = scalar_lea.sflag [#allocation5], 1
    %21 = vsyncpa %s20, 0
    loop: start=0, step=1, limit=6
    $region2: #{tpu_custom_call.1} parent=1 // loop_pre_header
      _
    $region3: #{tpu_custom_call.1} parent=1 // loop_header
      %s23 = sphi 0, %s27
      %p24 = scmp.ge.s32.totalorder %s23, 6
      %s30 = sphi 0, %s42
      %s31 = sphi 0, %s38
      %s32 = sphi 0, %s30
      %s33 = sphi 0, %s31
      %s34 = sphi 0, %s32
      %s35 = sphi 0, %s33
      %s43 = sphi 0, %s43
      %s45 = sphi 0, %s43
      %s46 = sphi 0, %s45
      %s60 = sphi 0, %s46
      %s64 = sphi 0, %s64
      %s66 = sphi 0, %s64
      %s67 = sphi 0, %s66
      %s81 = sphi 0, %s67
      %s85 = sphi 0, %s85
      %s87 = sphi 0, %s85
      %s88 = sphi 0, %s87
      %s102 = sphi 0, %s88
      %s110 = sphi 0, %s112
      %s113 = sphi 0, %s110
      %s114 = sphi 0, %s113
      %s130 = sphi 0, %s114
      %s136 = sphi 0, %s138
      %s139 = sphi 0, %s136
      %s140 = sphi 0, %s139
      %s156 = sphi 0, %s140
      %s162 = sphi 0, %s164
      %s165 = sphi 0, %s162
      %s166 = sphi 0, %s165
      %s182 = sphi 0, %s166
      %s188 = sphi 0, %s190
      %s191 = sphi 0, %s188
      %s192 = sphi 0, %s191
      %s208 = sphi 0, %s192
    $region4: #{tpu_custom_call.1} parent=1 // loop_header_branch
      %26 = sbr.rel (%p24) target = $region8
    $region5: #{tpu_custom_call.1} parent=1 // loop_body
      %s28 = ssub.s32 %s23, 1
      %s29 = ssub.s32 %s23, 2
      %s36 = sadd.s32 1, %s31
      %p37 = scmp.ge.s32.totalorder %s36, 2
      %s38 = scalar_select %p37, 0, %s36
      %s39 = sadd.s32 1, %s30
      %s40 = scalar_select %p37, %s39, %s30
      %p41 = scmp.ge.s32.totalorder %s40, 2
      %s42 = scalar_select %p41, 0, %s40
      %s44 = sadd.s32 %s43, 1
      %p47 = scmp.eq.s32.totalorder %s23, 3
      %p48 = scmp.ne.s32.totalorder %s43, %s45
      %p49 = scmp.eq.s32.totalorder %s23, 0
      %p50 = por %p48, %p49
      %p51 = scmp.ne.s32.totalorder %s43, %s45
      %p52 = scmp.eq.s32.totalorder %s28, 3
      %p53 = por %p51, %p52
      %p54 = scmp.ne.s32.totalorder %s45, %s46
      %p55 = scmp.eq.s32.totalorder %s28, 0
      %p56 = por %p54, %p55
      %p57 = scmp.ne.s32.totalorder %s45, %s46
      %p58 = scmp.eq.s32.totalorder %s29, 3
      %p59 = por %p57, %p58
      %p61 = scmp.ne.s32.totalorder %s46, %s60
      %p62 = scmp.eq.s32.totalorder %s29, 0
      %p63 = por %p61, %p62
      %s65 = sadd.s32 %s64, 1
      %p68 = scmp.eq.s32.totalorder %s23, 3
      %p69 = scmp.ne.s32.totalorder %s64, %s66
      %p70 = scmp.eq.s32.totalorder %s23, 0
      %p71 = por %p69, %p70
      %p72 = scmp.ne.s32.totalorder %s64, %s66
      %p73 = scmp.eq.s32.totalorder %s28, 3
      %p74 = por %p72, %p73
      %p75 = scmp.ne.s32.totalorder %s66, %s67
      %p76 = scmp.eq.s32.totalorder %s28, 0
      %p77 = por %p75, %p76
      %p78 = scmp.ne.s32.totalorder %s66, %s67
      %p79 = scmp.eq.s32.totalorder %s29, 3
      %p80 = por %p78, %p79
      %p82 = scmp.ne.s32.totalorder %s67, %s81
      %p83 = scmp.eq.s32.totalorder %s29, 0
      %p84 = por %p82, %p83
      %s86 = sadd.s32 %s85, 1
      %p89 = scmp.eq.s32.totalorder %s23, 3
      %p90 = scmp.ne.s32.totalorder %s85, %s87
      %p91 = scmp.eq.s32.totalorder %s23, 0
      %p92 = por %p90, %p91
      %p93 = scmp.ne.s32.totalorder %s85, %s87
      %p94 = scmp.eq.s32.totalorder %s28, 3
      %p95 = por %p93, %p94
      %p96 = scmp.ne.s32.totalorder %s87, %s88
      %p97 = scmp.eq.s32.totalorder %s28, 0
      %p98 = por %p96, %p97
      %p99 = scmp.ne.s32.totalorder %s87, %s88
      %p100 = scmp.eq.s32.totalorder %s29, 3
      %p101 = por %p99, %p100
      %p103 = scmp.ne.s32.totalorder %s88, %s102
      %p104 = scmp.eq.s32.totalorder %s29, 0
      %p105 = por %p103, %p104
      %s106 = ssub.s32 %s31, %s38
      %s107 = ssub.s32 %s30, %s42
      %s108 = sor.u32 %s106, %s107
      %p109 = scmp.eq.s32.totalorder %s108, 0
      %s111 = sadd.s32 %s110, 1
      %s112 = scalar_select %p109, %s110, %s111
      %p115 = pneg %p109
      %p116 = scmp.eq.s32.totalorder %s23, 3
      %p117 = por %p115, %p116
      %p118 = scmp.ne.s32.totalorder %s110, %s113
      %p119 = scmp.eq.s32.totalorder %s23, 0
      %p120 = por %p118, %p119
      %p121 = scmp.ne.s32.totalorder %s110, %s113
      %p122 = scmp.eq.s32.totalorder %s28, 3
      %p123 = por %p121, %p122
      %p124 = scmp.ne.s32.totalorder %s113, %s114
      %p125 = scmp.eq.s32.totalorder %s28, 0
      %p126 = por %p124, %p125
      %p127 = scmp.ne.s32.totalorder %s113, %s114
      %p128 = scmp.eq.s32.totalorder %s29, 3
      %p129 = por %p127, %p128
      %p131 = scmp.ne.s32.totalorder %s114, %s130
      %p132 = scmp.eq.s32.totalorder %s29, 0
      %p133 = por %p131, %p132
      %s134 = ssub.s32 %s30, %s42
      %p135 = scmp.eq.s32.totalorder %s134, 0
      %s137 = sadd.s32 %s136, 1
      %s138 = scalar_select %p135, %s136, %s137
      %p141 = pneg %p135
      %p142 = scmp.eq.s32.totalorder %s23, 3
      %p143 = por %p141, %p142
      %p144 = scmp.ne.s32.totalorder %s136, %s139
      %p145 = scmp.eq.s32.totalorder %s23, 0
      %p146 = por %p144, %p145
      %p147 = scmp.ne.s32.totalorder %s136, %s139
      %p148 = scmp.eq.s32.totalorder %s28, 3
      %p149 = por %p147, %p148
      %p150 = scmp.ne.s32.totalorder %s139, %s140
      %p151 = scmp.eq.s32.totalorder %s28, 0
      %p152 = por %p150, %p151
      %p153 = scmp.ne.s32.totalorder %s139, %s140
      %p154 = scmp.eq.s32.totalorder %s29, 3
      %p155 = por %p153, %p154
      %p157 = scmp.ne.s32.totalorder %s140, %s156
      %p158 = scmp.eq.s32.totalorder %s29, 0
      %p159 = por %p157, %p158
      %s160 = ssub.s32 %s30, %s42
      %p161 = scmp.eq.s32.totalorder %s160, 0
      %s163 = sadd.s32 %s162, 1
      %s164 = scalar_select %p161, %s162, %s163
      %p167 = pneg %p161
      %p168 = scmp.eq.s32.totalorder %s23, 3
      %p169 = por %p167, %p168
      %p170 = scmp.ne.s32.totalorder %s162, %s165
      %p171 = scmp.eq.s32.totalorder %s23, 0
      %p172 = por %p170, %p171
      %p173 = scmp.ne.s32.totalorder %s162, %s165
      %p174 = scmp.eq.s32.totalorder %s28, 3
      %p175 = por %p173, %p174
      %p176 = scmp.ne.s32.totalorder %s165, %s166
      %p177 = scmp.eq.s32.totalorder %s28, 0
      %p178 = por %p176, %p177
      %p179 = scmp.ne.s32.totalorder %s165, %s166
      %p180 = scmp.eq.s32.totalorder %s29, 3
      %p181 = por %p179, %p180
      %p183 = scmp.ne.s32.totalorder %s166, %s182
      %p184 = scmp.eq.s32.totalorder %s29, 0
      %p185 = por %p183, %p184
      %s186 = ssub.s32 %s30, %s42
      %p187 = scmp.eq.s32.totalorder %s186, 0
      %s189 = sadd.s32 %s188, 1
      %s190 = scalar_select %p187, %s188, %s189
      %p193 = pneg %p187
      %p194 = scmp.eq.s32.totalorder %s23, 3
      %p195 = por %p193, %p194
      %p196 = scmp.ne.s32.totalorder %s188, %s191
      %p197 = scmp.eq.s32.totalorder %s23, 0
      %p198 = por %p196, %p197
      %p199 = scmp.ne.s32.totalorder %s188, %s191
      %p200 = scmp.eq.s32.totalorder %s28, 3
      %p201 = por %p199, %p200
      %p202 = scmp.ne.s32.totalorder %s191, %s192
      %p203 = scmp.eq.s32.totalorder %s28, 0
      %p204 = por %p202, %p203
      %p205 = scmp.ne.s32.totalorder %s191, %s192
      %p206 = scmp.eq.s32.totalorder %s29, 3
      %p207 = por %p205, %p206
      %p209 = scmp.ne.s32.totalorder %s192, %s208
      %p210 = scmp.eq.s32.totalorder %s29, 0
      %p211 = por %p209, %p210
      %p212 = scmp.le.s32.totalorder 1, %s23
      %p213 = scmp.lt.s32.totalorder %s23, 5
      %p214 = pnand %p212, %p213
      %p215 = pneg %p214
      // Predicated region
      $region9: #{tpu_custom_call.1} parent=5 // pred_check
        _
      $region10: #{tpu_custom_call.1} parent=5 // pred_check_branch
        %217 = sbr.rel (%p214) target = $region12
      $region11: #{tpu_custom_call.1} parent=5 // pred_region
        %s218 = ssub.s32 %s23, 1
        // Predicated region
        $region13: #{tpu_custom_call.1} parent=11 // pred_check
          %p219 = pneg %p56
        $region14: #{tpu_custom_call.1} parent=11 // pred_check_branch
          %221 = sbr.rel (%p219) target = $region16
        $region15: #{tpu_custom_call.1} parent=11 // pred_region
          %s223 = ssub.s32 128, 128
          %224 = vsyncadd [#allocation4], %s223
          %s226 = sshll.u32 [#allocation3], 4
          %s227 = int_to_ptr.vmem [resolvable:$true] %s226
          %229 = dma.hbm_to_vmem [thread:$0]  %s0, 128, %s227, [#allocation4]
        $region16: #{tpu_custom_call.1} parent=11 // pred_fallthru
          _
        // Predicated region
        $region17: #{tpu_custom_call.1} parent=11 // pred_check
          %p230 = pneg %p77
        $region18: #{tpu_custom_call.1} parent=11 // pred_check_branch
          %232 = sbr.rel (%p230) target = $region20
        $region19: #{tpu_custom_call.1} parent=11 // pred_region
          %s234 = ssub.s32 1024, 1024
          %235 = vsyncadd [#allocation7], %s234
          %s237 = sshll.u32 [#allocation6], 4
          %s238 = int_to_ptr.vmem [resolvable:$true] %s237
          %240 = dma.hbm_to_vmem [thread:$0]  %s1, 1024, %s238, [#allocation7]
        $region20: #{tpu_custom_call.1} parent=11 // pred_fallthru
          _
        // Predicated region
        $region21: #{tpu_custom_call.1} parent=11 // pred_check
          %p241 = pneg %p98
        $region22: #{tpu_custom_call.1} parent=11 // pred_check_branch
          %243 = sbr.rel (%p241) target = $region24
        $region23: #{tpu_custom_call.1} parent=11 // pred_region
          %s245 = ssub.s32 1024, 1024
          %246 = vsyncadd [#allocation7], %s245
          %s248 = sshll.u32 [#allocation8], 4
          %s249 = int_to_ptr.vmem [resolvable:$true] %s248
          %251 = dma.hbm_to_vmem [thread:$0]  %s2, 1024, %s249, [#allocation7]
        $region24: #{tpu_custom_call.1} parent=11 // pred_fallthru
          _
      $region12: #{tpu_custom_call.1} parent=5 // pred_fallthru
        _
      %p252 = scmp.lt.s32.totalorder %s23, 4
      // Predicated region
      $region25: #{tpu_custom_call.1} parent=5 // pred_check
        %p253 = pneg %p252
      $region26: #{tpu_custom_call.1} parent=5 // pred_check_branch
        %255 = sbr.rel (%p253) target = $region28
      $region27: #{tpu_custom_call.1} parent=5 // pred_region
        // Predicated region
        $region29: #{tpu_custom_call.1} parent=27 // pred_check
          %p256 = pneg %p120
        $region30: #{tpu_custom_call.1} parent=27 // pred_check_branch
          %258 = sbr.rel (%p256) target = $region32
        $region31: #{tpu_custom_call.1} parent=27 // pred_region
          %s259 = sand.u32 %s23, 1
          %s260 = scalar_lea.sflag [#allocation10], %s259
          %s261 = sand.u32 %s110, 1
          %s262 = smul.addr %s261, 1024
          %s263 = scalar_lea.vmem [#allocation9], %s262
          %s264 = smul.u32 64, %s31
          %s265 = smul.u32 4, %s30
          %s267 = ssub.s32 16384, 16384
          %268 = vsyncadd %s260, %s267
          %s269 = smul.addr %s264, 8
          %s270 = sadd.s32 %s265, %s269
          %s271 = smul.addr %s270, 64
          %s272 = scalar_lea.hbm %s3, %s271
          %s273 = sshll.u32 %s263, 4
          %s274 = int_to_ptr.vmem [resolvable:$true] %s273
          %279 = dma.hbm_to_vmem [thread:$0]  %s272, 16384, %s274, %s260, 512, 256, 16
        $region32: #{tpu_custom_call.1} parent=27 // pred_fallthru
          _
        // Predicated region
        $region33: #{tpu_custom_call.1} parent=27 // pred_check
          %p280 = pneg %p146
        $region34: #{tpu_custom_call.1} parent=27 // pred_check_branch
          %282 = sbr.rel (%p280) target = $region36
        $region35: #{tpu_custom_call.1} parent=27 // pred_region
          %s283 = sand.u32 %s23, 1
          %s284 = scalar_lea.sflag [#allocation10], %s283
          %s285 = sand.u32 %s136, 1
          %s286 = smul.addr %s285, 4
          %s287 = scalar_lea.vmem [#allocation11], %s286
          %s288 = smul.u32 4, %s30
          %s290 = ssub.s32 64, 64
          %291 = vsyncadd %s284, %s290
          %s292 = smul.addr %s288, 16
          %s293 = scalar_lea.hbm %s4, %s292
          %s295 = sshll.u32 %s287, 4
          %s296 = int_to_ptr.vmem [resolvable:$true] %s295
          %298 = dma.hbm_to_vmem [thread:$0]  %s293, 64, %s296, %s284
        $region36: #{tpu_custom_call.1} parent=27 // pred_fallthru
          _
        // Predicated region
        $region37: #{tpu_custom_call.1} parent=27 // pred_check
          %p299 = pneg %p172
        $region38: #{tpu_custom_call.1} parent=27 // pred_check_branch
          %301 = sbr.rel (%p299) target = $region40
        $region39: #{tpu_custom_call.1} parent=27 // pred_region
          %s302 = sand.u32 %s162, 1
          %s303 = scalar_lea.sflag [#allocation13], %s302
          %s304 = sand.u32 %s162, 1
          %s305 = smul.addr %s304, 32
          %s306 = scalar_lea.vmem [#allocation12], %s305
          %s307 = smul.u32 4, %s30
          %s309 = ssub.s32 512, 512
          %310 = vsyncadd %s303, %s309
          %s311 = smul.addr %s307, 128
          %s312 = scalar_lea.hbm %s5, %s311
          %s314 = sshll.u32 %s306, 4
          %s315 = int_to_ptr.vmem [resolvable:$true] %s314
          %317 = dma.hbm_to_vmem [thread:$0]  %s312, 512, %s315, %s303
        $region40: #{tpu_custom_call.1} parent=27 // pred_fallthru
          _
      $region28: #{tpu_custom_call.1} parent=5 // pred_fallthru
        _
      %p318 = scmp.le.s32.totalorder 1, %s23
      %p319 = scmp.lt.s32.totalorder %s23, 5
      %p320 = pnand %p318, %p319
      %p321 = pneg %p320
      // Predicated region
      $region41: #{tpu_custom_call.1} parent=5 // pred_check
        _
      $region42: #{tpu_custom_call.1} parent=5 // pred_check_branch
        %323 = sbr.rel (%p320) target = $region44
      $region43: #{tpu_custom_call.1} parent=5 // pred_region
        %s324 = ssub.s32 %s23, 1
        // Predicated region
        $region45: #{tpu_custom_call.1} parent=43 // pred_check
          %p325 = pneg %p56
        $region46: #{tpu_custom_call.1} parent=43 // pred_check_branch
          %327 = sbr.rel (%p325) target = $region48
        $region47: #{tpu_custom_call.1} parent=43 // pred_region
          %328 = dma.done [#allocation4], 128
        $region48: #{tpu_custom_call.1} parent=43 // pred_fallthru
          _
        // Predicated region
        $region49: #{tpu_custom_call.1} parent=43 // pred_check
          %p329 = pneg %p77
        $region50: #{tpu_custom_call.1} parent=43 // pred_check_branch
          %331 = sbr.rel (%p329) target = $region52
        $region51: #{tpu_custom_call.1} parent=43 // pred_region
          %332 = dma.done [#allocation7], 1024
        $region52: #{tpu_custom_call.1} parent=43 // pred_fallthru
          _
        // Predicated region
        $region53: #{tpu_custom_call.1} parent=43 // pred_check
          %p333 = pneg %p98
        $region54: #{tpu_custom_call.1} parent=43 // pred_check_branch
          %335 = sbr.rel (%p333) target = $region56
        $region55: #{tpu_custom_call.1} parent=43 // pred_region
          %336 = dma.done [#allocation7], 1024
        $region56: #{tpu_custom_call.1} parent=43 // pred_fallthru
          _
        %s337 = sand.u32 %s28, 1
        %s338 = scalar_lea.sflag [#allocation10], %s337
        %s339 = sand.u32 %s113, 1
        %s340 = smul.addr %s339, 1024
        %s341 = scalar_lea.vmem [#allocation9], %s340
        // Predicated region
        $region57: #{tpu_custom_call.1} parent=43 // pred_check
          %p342 = pneg %p126
        $region58: #{tpu_custom_call.1} parent=43 // pred_check_branch
          %344 = sbr.rel (%p342) target = $region60
        $region59: #{tpu_custom_call.1} parent=43 // pred_region
          %345 = dma.done %s338, 16384
        $region60: #{tpu_custom_call.1} parent=43 // pred_fallthru
          _
        %s346 = sand.u32 %s28, 1
        %s347 = scalar_lea.sflag [#allocation10], %s346
        %s348 = sand.u32 %s139, 1
        %s349 = smul.addr %s348, 4
        %s350 = scalar_lea.vmem [#allocation11], %s349
        // Predicated region
        $region61: #{tpu_custom_call.1} parent=43 // pred_check
          %p351 = pneg %p152
        $region62: #{tpu_custom_call.1} parent=43 // pred_check_branch
          %353 = sbr.rel (%p351) target = $region64
        $region63: #{tpu_custom_call.1} parent=43 // pred_region
          %354 = dma.done %s347, 64
        $region64: #{tpu_custom_call.1} parent=43 // pred_fallthru
          _
        %s355 = sand.u32 %s165, 1
        %s356 = scalar_lea.sflag [#allocation13], %s355
        %s357 = sand.u32 %s165, 1
        %s358 = smul.addr %s357, 32
        %s359 = scalar_lea.vmem [#allocation12], %s358
        // Predicated region
        $region65: #{tpu_custom_call.1} parent=43 // pred_check
          %p360 = pneg %p178
        $region66: #{tpu_custom_call.1} parent=43 // pred_check_branch
          %362 = sbr.rel (%p360) target = $region68
        $region67: #{tpu_custom_call.1} parent=43 // pred_region
          %363 = dma.done %s356, 512
        $region68: #{tpu_custom_call.1} parent=43 // pred_fallthru
          _
        %p364 = pneg %p56
        %p365 = pneg %p53
        %p366 = pneg %p77
        %p367 = pneg %p74
        %p368 = pneg %p98
        %p369 = pneg %p95
        %s370 = sand.u32 %s28, 1
        %s371 = scalar_lea.sflag [#allocation10], %s370
        %s372 = sand.u32 %s113, 1
        %s373 = smul.addr %s372, 1024
        %s374 = scalar_lea.vmem [#allocation9], %s373
        %p375 = pneg %p126
        %p376 = pneg %p123
        %s377 = sand.u32 %s28, 1
        %s378 = scalar_lea.sflag [#allocation10], %s377
        %s379 = sand.u32 %s139, 1
        %s380 = smul.addr %s379, 4
        %s381 = scalar_lea.vmem [#allocation11], %s380
        %p382 = pneg %p152
        %p383 = pneg %p149
        %s384 = sand.u32 %s165, 1
        %s385 = scalar_lea.sflag [#allocation13], %s384
        %s386 = sand.u32 %s165, 1
        %s387 = smul.addr %s386, 32
        %s388 = scalar_lea.vmem [#allocation12], %s387
        %p389 = pneg %p178
        %p390 = pneg %p175
        %p391 = pneg %p204
        %p392 = pneg %p201
        %s393 = sand.u32 %s191, 1
        %s394 = scalar_lea.sflag [#allocation5], %s393
        %s395 = sand.u32 %s191, 1
        %s396 = smul.addr %s395, 8
        %s397 = scalar_lea.vmem [#allocation14], %s396
        %s398 = smul.u32 64, %s33
        %s399 = smul.u32 4, %s32
        %s400 = smul.u32 4, %s32
        %s401 = smul.u32 4, %s32
        %p402 = scmp.eq.s32.totalorder %s33, 0
        // Predicated region
        $region69: #{tpu_custom_call.1} parent=43 // pred_check
          %p403 = pneg %p402
        $region70: #{tpu_custom_call.1} parent=43 // pred_check_branch
          %405 = sbr.rel (%p403) target = $region72
        $region71: #{tpu_custom_call.1} parent=43 // pred_region
          %406 = vst [vmem:[#allocation2] sm:$0xff] 0.0
          %407 = vst [vmem:[#allocation2 + $0x8] sm:$0xff] 0.0
          %408 = vst [vmem:[#allocation2 + $0x10] sm:$0xff] 0.0
          %409 = vst [vmem:[#allocation2 + $0x18] sm:$0xff] 0.0
        $region72: #{tpu_custom_call.1} parent=43 // pred_fallthru
          _
        %v410 = vld [vmem:[#allocation3] sm:$0xff]
        %s411 = smul.u32 %s33, 512
        %s412 = sshra.s32 %s411, 7
        %s413 = sand.u32 %s411, 127
        %s414 = smul.addr %s412, 8
        %s415 = scalar_lea.vmem [#allocation6], %s414
        %v416 = vld [vmem:[%s415] sm:$0xff]
        %v417 = vld [vmem:[%s415 + $0x8] sm:$0xff]
        %v418 = vld [vmem:[%s415 + $0x10] sm:$0xff]
        %v419 = vld [vmem:[%s415 + $0x18] sm:$0xff]
        %421 = vset.pattern.permute.xlu0 0
        %422 = vperm.xlu0 %421, %v410
        %v423 = vpop.permute.xlu0 %422
        %v425 = vmul.f32 %v423, %v416
        %v426 = vmul.f32 %v423, %v417
        %v427 = vmul.f32 %v423, %v418
        %v428 = vmul.f32 %v423, %v419
        %s429 = smul.addr %s412, 8
        %s430 = scalar_lea.vmem [#allocation8], %s429
        %v431 = vld [vmem:[%s430] sm:$0xff]
        %v432 = vld [vmem:[%s430 + $0x8] sm:$0xff]
        %v433 = vld [vmem:[%s430 + $0x10] sm:$0xff]
        %v434 = vld [vmem:[%s430 + $0x18] sm:$0xff]
        %435 = vset.pattern.permute.xlu0 1
        %436 = vperm.xlu0 %435, %v410
        %v437 = vpop.permute.xlu0 %436
        %v439 = vmul.f32 %v437, %v431
        %v440 = vmul.f32 %v437, %v432
        %v441 = vmul.f32 %v437, %v433
        %v442 = vmul.f32 %v437, %v434
        %v443 = vadd.f32 %v425, %v439
        %v444 = vadd.f32 %v426, %v440
        %v445 = vadd.f32 %v427, %v441
        %v446 = vadd.f32 %v428, %v442
        %v447 = vld [vmem:[#allocation2] sm:$0xff]
        %v448 = vld [vmem:[#allocation2 + $0x8] sm:$0xff]
        %v449 = vld [vmem:[#allocation2 + $0x10] sm:$0xff]
        %v450 = vld [vmem:[#allocation2 + $0x18] sm:$0xff]
        %v451 = vpack.c.bf16 %v443, %v443
        %v452 = vpack.c.bf16 %v444, %v444
        %v453 = vpack.c.bf16 %v445, %v445
        %v454 = vpack.c.bf16 %v446, %v446
        %v455 = vld [vmem:[%s341] sm:$0xff]
        %v456 = vld [vmem:[%s341 + $0x8] sm:$0xff]
        %v457 = vld [vmem:[%s341 + $0x10] sm:$0xff]
        %v458 = vld [vmem:[%s341 + $0x18] sm:$0xff]
        %v459 = vld [vmem:[%s341 + $0x20] sm:$0xff]
        %v460 = vld [vmem:[%s341 + $0x28] sm:$0xff]
        %v461 = vld [vmem:[%s341 + $0x30] sm:$0xff]
        %v462 = vld [vmem:[%s341 + $0x38] sm:$0xff]
        %v463 = vld [vmem:[%s341 + $0x40] sm:$0xff]
        %v464 = vld [vmem:[%s341 + $0x48] sm:$0xff]
        %v465 = vld [vmem:[%s341 + $0x50] sm:$0xff]
        %v466 = vld [vmem:[%s341 + $0x58] sm:$0xff]
        %v467 = vld [vmem:[%s341 + $0x60] sm:$0xff]
        %v468 = vld [vmem:[%s341 + $0x68] sm:$0xff]
        %v469 = vld [vmem:[%s341 + $0x70] sm:$0xff]
        %v470 = vld [vmem:[%s341 + $0x78] sm:$0xff]
        %v471 = vld [vmem:[%s341 + $0x80] sm:$0xff]
        %v472 = vld [vmem:[%s341 + $0x88] sm:$0xff]
        %v473 = vld [vmem:[%s341 + $0x90] sm:$0xff]
        %v474 = vld [vmem:[%s341 + $0x98] sm:$0xff]
        %v475 = vld [vmem:[%s341 + $0xa0] sm:$0xff]
        %v476 = vld [vmem:[%s341 + $0xa8] sm:$0xff]
        %v477 = vld [vmem:[%s341 + $0xb0] sm:$0xff]
        %v478 = vld [vmem:[%s341 + $0xb8] sm:$0xff]
        %v479 = vld [vmem:[%s341 + $0xc0] sm:$0xff]
        %v480 = vld [vmem:[%s341 + $0xc8] sm:$0xff]
        %v481 = vld [vmem:[%s341 + $0xd0] sm:$0xff]
        %v482 = vld [vmem:[%s341 + $0xd8] sm:$0xff]
        %v483 = vld [vmem:[%s341 + $0xe0] sm:$0xff]
        %v484 = vld [vmem:[%s341 + $0xe8] sm:$0xff]
        %v485 = vld [vmem:[%s341 + $0xf0] sm:$0xff]
        %v486 = vld [vmem:[%s341 + $0xf8] sm:$0xff]
        %v487 = vld [vmem:[%s341 + $0x100] sm:$0xff]
        %v488 = vld [vmem:[%s341 + $0x108] sm:$0xff]
        %v489 = vld [vmem:[%s341 + $0x110] sm:$0xff]
        %v490 = vld [vmem:[%s341 + $0x118] sm:$0xff]
        %v491 = vld [vmem:[%s341 + $0x120] sm:$0xff]
        %v492 = vld [vmem:[%s341 + $0x128] sm:$0xff]
        %v493 = vld [vmem:[%s341 + $0x130] sm:$0xff]
        %v494 = vld [vmem:[%s341 + $0x138] sm:$0xff]
        %v495 = vld [vmem:[%s341 + $0x140] sm:$0xff]
        %v496 = vld [vmem:[%s341 + $0x148] sm:$0xff]
        %v497 = vld [vmem:[%s341 + $0x150] sm:$0xff]
        %v498 = vld [vmem:[%s341 + $0x158] sm:$0xff]
        %v499 = vld [vmem:[%s341 + $0x160] sm:$0xff]
        %v500 = vld [vmem:[%s341 + $0x168] sm:$0xff]
        %v501 = vld [vmem:[%s341 + $0x170] sm:$0xff]
        %v502 = vld [vmem:[%s341 + $0x178] sm:$0xff]
        %v503 = vld [vmem:[%s341 + $0x180] sm:$0xff]
        %v504 = vld [vmem:[%s341 + $0x188] sm:$0xff]
        %v505 = vld [vmem:[%s341 + $0x190] sm:$0xff]
        %v506 = vld [vmem:[%s341 + $0x198] sm:$0xff]
        %v507 = vld [vmem:[%s341 + $0x1a0] sm:$0xff]
        %v508 = vld [vmem:[%s341 + $0x1a8] sm:$0xff]
        %v509 = vld [vmem:[%s341 + $0x1b0] sm:$0xff]
        %v510 = vld [vmem:[%s341 + $0x1b8] sm:$0xff]
        %v511 = vld [vmem:[%s341 + $0x1c0] sm:$0xff]
        %v512 = vld [vmem:[%s341 + $0x1c8] sm:$0xff]
        %v513 = vld [vmem:[%s341 + $0x1d0] sm:$0xff]
        %v514 = vld [vmem:[%s341 + $0x1d8] sm:$0xff]
        %v515 = vld [vmem:[%s341 + $0x1e0] sm:$0xff]
        %v516 = vld [vmem:[%s341 + $0x1e8] sm:$0xff]
        %v517 = vld [vmem:[%s341 + $0x1f0] sm:$0xff]
        %v518 = vld [vmem:[%s341 + $0x1f8] sm:$0xff]
        %v519 = vld [vmem:[%s341 + $0x200] sm:$0xff]
        %v520 = vld [vmem:[%s341 + $0x208] sm:$0xff]
        %v521 = vld [vmem:[%s341 + $0x210] sm:$0xff]
        %v522 = vld [vmem:[%s341 + $0x218] sm:$0xff]
        %v523 = vld [vmem:[%s341 + $0x220] sm:$0xff]
        %v524 = vld [vmem:[%s341 + $0x228] sm:$0xff]
        %v525 = vld [vmem:[%s341 + $0x230] sm:$0xff]
        %v526 = vld [vmem:[%s341 + $0x238] sm:$0xff]
        %v527 = vld [vmem:[%s341 + $0x240] sm:$0xff]
        %v528 = vld [vmem:[%s341 + $0x248] sm:$0xff]
        %v529 = vld [vmem:[%s341 + $0x250] sm:$0xff]
        %v530 = vld [vmem:[%s341 + $0x258] sm:$0xff]
        %v531 = vld [vmem:[%s341 + $0x260] sm:$0xff]
        %v532 = vld [vmem:[%s341 + $0x268] sm:$0xff]
        %v533 = vld [vmem:[%s341 + $0x270] sm:$0xff]
        %v534 = vld [vmem:[%s341 + $0x278] sm:$0xff]
        %v535 = vld [vmem:[%s341 + $0x280] sm:$0xff]
        %v536 = vld [vmem:[%s341 + $0x288] sm:$0xff]
        %v537 = vld [vmem:[%s341 + $0x290] sm:$0xff]
        %v538 = vld [vmem:[%s341 + $0x298] sm:$0xff]
        %v539 = vld [vmem:[%s341 + $0x2a0] sm:$0xff]
        %v540 = vld [vmem:[%s341 + $0x2a8] sm:$0xff]
        %v541 = vld [vmem:[%s341 + $0x2b0] sm:$0xff]
        %v542 = vld [vmem:[%s341 + $0x2b8] sm:$0xff]
        %v543 = vld [vmem:[%s341 + $0x2c0] sm:$0xff]
        %v544 = vld [vmem:[%s341 + $0x2c8] sm:$0xff]
        %v545 = vld [vmem:[%s341 + $0x2d0] sm:$0xff]
        %v546 = vld [vmem:[%s341 + $0x2d8] sm:$0xff]
        %v547 = vld [vmem:[%s341 + $0x2e0] sm:$0xff]
        %v548 = vld [vmem:[%s341 + $0x2e8] sm:$0xff]
        %v549 = vld [vmem:[%s341 + $0x2f0] sm:$0xff]
        %v550 = vld [vmem:[%s341 + $0x2f8] sm:$0xff]
        %v551 = vld [vmem:[%s341 + $0x300] sm:$0xff]
        %v552 = vld [vmem:[%s341 + $0x308] sm:$0xff]
        %v553 = vld [vmem:[%s341 + $0x310] sm:$0xff]
        %v554 = vld [vmem:[%s341 + $0x318] sm:$0xff]
        %v555 = vld [vmem:[%s341 + $0x320] sm:$0xff]
        %v556 = vld [vmem:[%s341 + $0x328] sm:$0xff]
        %v557 = vld [vmem:[%s341 + $0x330] sm:$0xff]
        %v558 = vld [vmem:[%s341 + $0x338] sm:$0xff]
        %v559 = vld [vmem:[%s341 + $0x340] sm:$0xff]
        %v560 = vld [vmem:[%s341 + $0x348] sm:$0xff]
        %v561 = vld [vmem:[%s341 + $0x350] sm:$0xff]
        %v562 = vld [vmem:[%s341 + $0x358] sm:$0xff]
        %v563 = vld [vmem:[%s341 + $0x360] sm:$0xff]
        %v564 = vld [vmem:[%s341 + $0x368] sm:$0xff]
        %v565 = vld [vmem:[%s341 + $0x370] sm:$0xff]
        %v566 = vld [vmem:[%s341 + $0x378] sm:$0xff]
        %v567 = vld [vmem:[%s341 + $0x380] sm:$0xff]
        %v568 = vld [vmem:[%s341 + $0x388] sm:$0xff]
        %v569 = vld [vmem:[%s341 + $0x390] sm:$0xff]
        %v570 = vld [vmem:[%s341 + $0x398] sm:$0xff]
        %v571 = vld [vmem:[%s341 + $0x3a0] sm:$0xff]
        %v572 = vld [vmem:[%s341 + $0x3a8] sm:$0xff]
        %v573 = vld [vmem:[%s341 + $0x3b0] sm:$0xff]
        %v574 = vld [vmem:[%s341 + $0x3b8] sm:$0xff]
        %v575 = vld [vmem:[%s341 + $0x3c0] sm:$0xff]
        %v576 = vld [vmem:[%s341 + $0x3c8] sm:$0xff]
        %v577 = vld [vmem:[%s341 + $0x3d0] sm:$0xff]
        %v578 = vld [vmem:[%s341 + $0x3d8] sm:$0xff]
        %v579 = vld [vmem:[%s341 + $0x3e0] sm:$0xff]
        %v580 = vld [vmem:[%s341 + $0x3e8] sm:$0xff]
        %v581 = vld [vmem:[%s341 + $0x3f0] sm:$0xff]
        %v582 = vld [vmem:[%s341 + $0x3f8] sm:$0xff]
        %v711 = vunpack.c.l.b16 %v455
        %v712 = vunpack.c.h.b16 %v455
        %v713 = vunpack.c.l.b16 %v456
        %v714 = vunpack.c.h.b16 %v456
        %v715 = vunpack.c.l.b16 %v457
        %v716 = vunpack.c.h.b16 %v457
        %v717 = vunpack.c.l.b16 %v458
        %v718 = vunpack.c.h.b16 %v458
        %v719 = vunpack.c.l.b16 %v459
        %v720 = vunpack.c.h.b16 %v459
        %v721 = vunpack.c.l.b16 %v460
        %v722 = vunpack.c.h.b16 %v460
        %v723 = vunpack.c.l.b16 %v461
        %v724 = vunpack.c.h.b16 %v461
        %v725 = vunpack.c.l.b16 %v462
        %v726 = vunpack.c.h.b16 %v462
        %v727 = vunpack.c.l.b16 %v463
        %v728 = vunpack.c.h.b16 %v463
        %v729 = vunpack.c.l.b16 %v464
        %v730 = vunpack.c.h.b16 %v464
        %v731 = vunpack.c.l.b16 %v465
        %v732 = vunpack.c.h.b16 %v465
        %v733 = vunpack.c.l.b16 %v466
        %v734 = vunpack.c.h.b16 %v466
        %v735 = vunpack.c.l.b16 %v467
        %v736 = vunpack.c.h.b16 %v467
        %v737 = vunpack.c.l.b16 %v468
        %v738 = vunpack.c.h.b16 %v468
        %v739 = vunpack.c.l.b16 %v469
        %v740 = vunpack.c.h.b16 %v469
        %v741 = vunpack.c.l.b16 %v470
        %v742 = vunpack.c.h.b16 %v470
        %v743 = vunpack.c.l.b16 %v471
        %v744 = vunpack.c.h.b16 %v471
        %v745 = vunpack.c.l.b16 %v472
        %v746 = vunpack.c.h.b16 %v472
        %v747 = vunpack.c.l.b16 %v473
        %v748 = vunpack.c.h.b16 %v473
        %v749 = vunpack.c.l.b16 %v474
        %v750 = vunpack.c.h.b16 %v474
        %v751 = vunpack.c.l.b16 %v475
        %v752 = vunpack.c.h.b16 %v475
        %v753 = vunpack.c.l.b16 %v476
        %v754 = vunpack.c.h.b16 %v476
        %v755 = vunpack.c.l.b16 %v477
        %v756 = vunpack.c.h.b16 %v477
        %v757 = vunpack.c.l.b16 %v478
        %v758 = vunpack.c.h.b16 %v478
        %v759 = vunpack.c.l.b16 %v479
        %v760 = vunpack.c.h.b16 %v479
        %v761 = vunpack.c.l.b16 %v480
        %v762 = vunpack.c.h.b16 %v480
        %v763 = vunpack.c.l.b16 %v481
        %v764 = vunpack.c.h.b16 %v481
        %v765 = vunpack.c.l.b16 %v482
        %v766 = vunpack.c.h.b16 %v482
        %v767 = vunpack.c.l.b16 %v483
        %v768 = vunpack.c.h.b16 %v483
        %v769 = vunpack.c.l.b16 %v484
        %v770 = vunpack.c.h.b16 %v484
        %v771 = vunpack.c.l.b16 %v485
        %v772 = vunpack.c.h.b16 %v485
        %v773 = vunpack.c.l.b16 %v486
        %v774 = vunpack.c.h.b16 %v486
        %v775 = vunpack.c.l.b16 %v487
        %v776 = vunpack.c.h.b16 %v487
        %v777 = vunpack.c.l.b16 %v488
        %v778 = vunpack.c.h.b16 %v488
        %v779 = vunpack.c.l.b16 %v489
        %v780 = vunpack.c.h.b16 %v489
        %v781 = vunpack.c.l.b16 %v490
        %v782 = vunpack.c.h.b16 %v490
        %v783 = vunpack.c.l.b16 %v491
        %v784 = vunpack.c.h.b16 %v491
        %v785 = vunpack.c.l.b16 %v492
        %v786 = vunpack.c.h.b16 %v492
        %v787 = vunpack.c.l.b16 %v493
        %v788 = vunpack.c.h.b16 %v493
        %v789 = vunpack.c.l.b16 %v494
        %v790 = vunpack.c.h.b16 %v494
        %v791 = vunpack.c.l.b16 %v495
        %v792 = vunpack.c.h.b16 %v495
        %v793 = vunpack.c.l.b16 %v496
        %v794 = vunpack.c.h.b16 %v496
        %v795 = vunpack.c.l.b16 %v497
        %v796 = vunpack.c.h.b16 %v497
        %v797 = vunpack.c.l.b16 %v498
        %v798 = vunpack.c.h.b16 %v498
        %v799 = vunpack.c.l.b16 %v499
        %v800 = vunpack.c.h.b16 %v499
        %v801 = vunpack.c.l.b16 %v500
        %v802 = vunpack.c.h.b16 %v500
        %v803 = vunpack.c.l.b16 %v501
        %v804 = vunpack.c.h.b16 %v501
        %v805 = vunpack.c.l.b16 %v502
        %v806 = vunpack.c.h.b16 %v502
        %v807 = vunpack.c.l.b16 %v503
        %v808 = vunpack.c.h.b16 %v503
        %v809 = vunpack.c.l.b16 %v504
        %v810 = vunpack.c.h.b16 %v504
        %v811 = vunpack.c.l.b16 %v505
        %v812 = vunpack.c.h.b16 %v505
        %v813 = vunpack.c.l.b16 %v506
        %v814 = vunpack.c.h.b16 %v506
        %v815 = vunpack.c.l.b16 %v507
        %v816 = vunpack.c.h.b16 %v507
        %v817 = vunpack.c.l.b16 %v508
        %v818 = vunpack.c.h.b16 %v508
        %v819 = vunpack.c.l.b16 %v509
        %v820 = vunpack.c.h.b16 %v509
        %v821 = vunpack.c.l.b16 %v510
        %v822 = vunpack.c.h.b16 %v510
        %v823 = vunpack.c.l.b16 %v511
        %v824 = vunpack.c.h.b16 %v511
        %v825 = vunpack.c.l.b16 %v512
        %v826 = vunpack.c.h.b16 %v512
        %v827 = vunpack.c.l.b16 %v513
        %v828 = vunpack.c.h.b16 %v513
        %v829 = vunpack.c.l.b16 %v514
        %v830 = vunpack.c.h.b16 %v514
        %v831 = vunpack.c.l.b16 %v515
        %v832 = vunpack.c.h.b16 %v515
        %v833 = vunpack.c.l.b16 %v516
        %v834 = vunpack.c.h.b16 %v516
        %v835 = vunpack.c.l.b16 %v517
        %v836 = vunpack.c.h.b16 %v517
        %v837 = vunpack.c.l.b16 %v518
        %v838 = vunpack.c.h.b16 %v518
        %v839 = vunpack.c.l.b16 %v519
        %v840 = vunpack.c.h.b16 %v519
        %v841 = vunpack.c.l.b16 %v520
        %v842 = vunpack.c.h.b16 %v520
        %v843 = vunpack.c.l.b16 %v521
        %v844 = vunpack.c.h.b16 %v521
        %v845 = vunpack.c.l.b16 %v522
        %v846 = vunpack.c.h.b16 %v522
        %v847 = vunpack.c.l.b16 %v523
        %v848 = vunpack.c.h.b16 %v523
        %v849 = vunpack.c.l.b16 %v524
        %v850 = vunpack.c.h.b16 %v524
        %v851 = vunpack.c.l.b16 %v525
        %v852 = vunpack.c.h.b16 %v525
        %v853 = vunpack.c.l.b16 %v526
        %v854 = vunpack.c.h.b16 %v526
        %v855 = vunpack.c.l.b16 %v527
        %v856 = vunpack.c.h.b16 %v527
        %v857 = vunpack.c.l.b16 %v528
        %v858 = vunpack.c.h.b16 %v528
        %v859 = vunpack.c.l.b16 %v529
        %v860 = vunpack.c.h.b16 %v529
        %v861 = vunpack.c.l.b16 %v530
        %v862 = vunpack.c.h.b16 %v530
        %v863 = vunpack.c.l.b16 %v531
        %v864 = vunpack.c.h.b16 %v531
        %v865 = vunpack.c.l.b16 %v532
        %v866 = vunpack.c.h.b16 %v532
        %v867 = vunpack.c.l.b16 %v533
        %v868 = vunpack.c.h.b16 %v533
        %v869 = vunpack.c.l.b16 %v534
        %v870 = vunpack.c.h.b16 %v534
        %v871 = vunpack.c.l.b16 %v535
        %v872 = vunpack.c.h.b16 %v535
        %v873 = vunpack.c.l.b16 %v536
        %v874 = vunpack.c.h.b16 %v536
        %v875 = vunpack.c.l.b16 %v537
        %v876 = vunpack.c.h.b16 %v537
        %v877 = vunpack.c.l.b16 %v538
        %v878 = vunpack.c.h.b16 %v538
        %v879 = vunpack.c.l.b16 %v539
        %v880 = vunpack.c.h.b16 %v539
        %v881 = vunpack.c.l.b16 %v540
        %v882 = vunpack.c.h.b16 %v540
        %v883 = vunpack.c.l.b16 %v541
        %v884 = vunpack.c.h.b16 %v541
        %v885 = vunpack.c.l.b16 %v542
        %v886 = vunpack.c.h.b16 %v542
        %v887 = vunpack.c.l.b16 %v543
        %v888 = vunpack.c.h.b16 %v543
        %v889 = vunpack.c.l.b16 %v544
        %v890 = vunpack.c.h.b16 %v544
        %v891 = vunpack.c.l.b16 %v545
        %v892 = vunpack.c.h.b16 %v545
        %v893 = vunpack.c.l.b16 %v546
        %v894 = vunpack.c.h.b16 %v546
        %v895 = vunpack.c.l.b16 %v547
        %v896 = vunpack.c.h.b16 %v547
        %v897 = vunpack.c.l.b16 %v548
        %v898 = vunpack.c.h.b16 %v548
        %v899 = vunpack.c.l.b16 %v549
        %v900 = vunpack.c.h.b16 %v549
        %v901 = vunpack.c.l.b16 %v550
        %v902 = vunpack.c.h.b16 %v550
        %v903 = vunpack.c.l.b16 %v551
        %v904 = vunpack.c.h.b16 %v551
        %v905 = vunpack.c.l.b16 %v552
        %v906 = vunpack.c.h.b16 %v552
        %v907 = vunpack.c.l.b16 %v553
        %v908 = vunpack.c.h.b16 %v553
        %v909 = vunpack.c.l.b16 %v554
        %v910 = vunpack.c.h.b16 %v554
        %v911 = vunpack.c.l.b16 %v555
        %v912 = vunpack.c.h.b16 %v555
        %v913 = vunpack.c.l.b16 %v556
        %v914 = vunpack.c.h.b16 %v556
        %v915 = vunpack.c.l.b16 %v557
        %v916 = vunpack.c.h.b16 %v557
        %v917 = vunpack.c.l.b16 %v558
        %v918 = vunpack.c.h.b16 %v558
        %v919 = vunpack.c.l.b16 %v559
        %v920 = vunpack.c.h.b16 %v559
        %v921 = vunpack.c.l.b16 %v560
        %v922 = vunpack.c.h.b16 %v560
        %v923 = vunpack.c.l.b16 %v561
        %v924 = vunpack.c.h.b16 %v561
        %v925 = vunpack.c.l.b16 %v562
        %v926 = vunpack.c.h.b16 %v562
        %v927 = vunpack.c.l.b16 %v563
        %v928 = vunpack.c.h.b16 %v563
        %v929 = vunpack.c.l.b16 %v564
        %v930 = vunpack.c.h.b16 %v564
        %v931 = vunpack.c.l.b16 %v565
        %v932 = vunpack.c.h.b16 %v565
        %v933 = vunpack.c.l.b16 %v566
        %v934 = vunpack.c.h.b16 %v566
        %v935 = vunpack.c.l.b16 %v567
        %v936 = vunpack.c.h.b16 %v567
        %v937 = vunpack.c.l.b16 %v568
        %v938 = vunpack.c.h.b16 %v568
        %v939 = vunpack.c.l.b16 %v569
        %v940 = vunpack.c.h.b16 %v569
        %v941 = vunpack.c.l.b16 %v570
        %v942 = vunpack.c.h.b16 %v570
        %v943 = vunpack.c.l.b16 %v571
        %v944 = vunpack.c.h.b16 %v571
        %v945 = vunpack.c.l.b16 %v572
        %v946 = vunpack.c.h.b16 %v572
        %v947 = vunpack.c.l.b16 %v573
        %v948 = vunpack.c.h.b16 %v573
        %v949 = vunpack.c.l.b16 %v574
        %v950 = vunpack.c.h.b16 %v574
        %v951 = vunpack.c.l.b16 %v575
        %v952 = vunpack.c.h.b16 %v575
        %v953 = vunpack.c.l.b16 %v576
        %v954 = vunpack.c.h.b16 %v576
        %v955 = vunpack.c.l.b16 %v577
        %v956 = vunpack.c.h.b16 %v577
        %v957 = vunpack.c.l.b16 %v578
        %v958 = vunpack.c.h.b16 %v578
        %v959 = vunpack.c.l.b16 %v579
        %v960 = vunpack.c.h.b16 %v579
        %v961 = vunpack.c.l.b16 %v580
        %v962 = vunpack.c.h.b16 %v580
        %v963 = vunpack.c.l.b16 %v581
        %v964 = vunpack.c.h.b16 %v581
        %v965 = vunpack.c.l.b16 %v582
        %v966 = vunpack.c.h.b16 %v582
        %v967 = vpack.c.b16 %v715, %v711
        %v968 = vpack.c.b16 %v716, %v712
        %v969 = vpack.c.b16 %v717, %v713
        %v970 = vpack.c.b16 %v718, %v714
        %v971 = vpack.c.b16 %v723, %v719
        %v972 = vpack.c.b16 %v724, %v720
        %v973 = vpack.c.b16 %v725, %v721
        %v974 = vpack.c.b16 %v726, %v722
        %v975 = vpack.c.b16 %v731, %v727
        %v976 = vpack.c.b16 %v732, %v728
        %v977 = vpack.c.b16 %v733, %v729
        %v978 = vpack.c.b16 %v734, %v730
        %v979 = vpack.c.b16 %v739, %v735
        %v980 = vpack.c.b16 %v740, %v736
        %v981 = vpack.c.b16 %v741, %v737
        %v982 = vpack.c.b16 %v742, %v738
        %v983 = vpack.c.b16 %v747, %v743
        %v984 = vpack.c.b16 %v748, %v744
        %v985 = vpack.c.b16 %v749, %v745
        %v986 = vpack.c.b16 %v750, %v746
        %v987 = vpack.c.b16 %v755, %v751
        %v988 = vpack.c.b16 %v756, %v752
        %v989 = vpack.c.b16 %v757, %v753
        %v990 = vpack.c.b16 %v758, %v754
        %v991 = vpack.c.b16 %v763, %v759
        %v992 = vpack.c.b16 %v764, %v760
        %v993 = vpack.c.b16 %v765, %v761
        %v994 = vpack.c.b16 %v766, %v762
        %v995 = vpack.c.b16 %v771, %v767
        %v996 = vpack.c.b16 %v772, %v768
        %v997 = vpack.c.b16 %v773, %v769
        %v998 = vpack.c.b16 %v774, %v770
        %v999 = vpack.c.b16 %v779, %v775
        %v1000 = vpack.c.b16 %v780, %v776
        %v1001 = vpack.c.b16 %v781, %v777
        %v1002 = vpack.c.b16 %v782, %v778
        %v1003 = vpack.c.b16 %v787, %v783
        %v1004 = vpack.c.b16 %v788, %v784
        %v1005 = vpack.c.b16 %v789, %v785
        %v1006 = vpack.c.b16 %v790, %v786
        %v1007 = vpack.c.b16 %v795, %v791
        %v1008 = vpack.c.b16 %v796, %v792
        %v1009 = vpack.c.b16 %v797, %v793
        %v1010 = vpack.c.b16 %v798, %v794
        %v1011 = vpack.c.b16 %v803, %v799
        %v1012 = vpack.c.b16 %v804, %v800
        %v1013 = vpack.c.b16 %v805, %v801
        %v1014 = vpack.c.b16 %v806, %v802
        %v1015 = vpack.c.b16 %v811, %v807
        %v1016 = vpack.c.b16 %v812, %v808
        %v1017 = vpack.c.b16 %v813, %v809
        %v1018 = vpack.c.b16 %v814, %v810
        %v1019 = vpack.c.b16 %v819, %v815
        %v1020 = vpack.c.b16 %v820, %v816
        %v1021 = vpack.c.b16 %v821, %v817
        %v1022 = vpack.c.b16 %v822, %v818
        %v1023 = vpack.c.b16 %v827, %v823
        %v1024 = vpack.c.b16 %v828, %v824
        %v1025 = vpack.c.b16 %v829, %v825
        %v1026 = vpack.c.b16 %v830, %v826
        %v1027 = vpack.c.b16 %v835, %v831
        %v1028 = vpack.c.b16 %v836, %v832
        %v1029 = vpack.c.b16 %v837, %v833
        %v1030 = vpack.c.b16 %v838, %v834
        %v1031 = vpack.c.b16 %v843, %v839
        %v1032 = vpack.c.b16 %v844, %v840
        %v1033 = vpack.c.b16 %v845, %v841
        %v1034 = vpack.c.b16 %v846, %v842
        %v1035 = vpack.c.b16 %v851, %v847
        %v1036 = vpack.c.b16 %v852, %v848
        %v1037 = vpack.c.b16 %v853, %v849
        %v1038 = vpack.c.b16 %v854, %v850
        %v1039 = vpack.c.b16 %v859, %v855
        %v1040 = vpack.c.b16 %v860, %v856
        %v1041 = vpack.c.b16 %v861, %v857
        %v1042 = vpack.c.b16 %v862, %v858
        %v1043 = vpack.c.b16 %v867, %v863
        %v1044 = vpack.c.b16 %v868, %v864
        %v1045 = vpack.c.b16 %v869, %v865
        %v1046 = vpack.c.b16 %v870, %v866
        %v1047 = vpack.c.b16 %v875, %v871
        %v1048 = vpack.c.b16 %v876, %v872
        %v1049 = vpack.c.b16 %v877, %v873
        %v1050 = vpack.c.b16 %v878, %v874
        %v1051 = vpack.c.b16 %v883, %v879
        %v1052 = vpack.c.b16 %v884, %v880
        %v1053 = vpack.c.b16 %v885, %v881
        %v1054 = vpack.c.b16 %v886, %v882
        %v1055 = vpack.c.b16 %v891, %v887
        %v1056 = vpack.c.b16 %v892, %v888
        %v1057 = vpack.c.b16 %v893, %v889
        %v1058 = vpack.c.b16 %v894, %v890
        %v1059 = vpack.c.b16 %v899, %v895
        %v1060 = vpack.c.b16 %v900, %v896
        %v1061 = vpack.c.b16 %v901, %v897
        %v1062 = vpack.c.b16 %v902, %v898
        %v1063 = vpack.c.b16 %v907, %v903
        %v1064 = vpack.c.b16 %v908, %v904
        %v1065 = vpack.c.b16 %v909, %v905
        %v1066 = vpack.c.b16 %v910, %v906
        %v1067 = vpack.c.b16 %v915, %v911
        %v1068 = vpack.c.b16 %v916, %v912
        %v1069 = vpack.c.b16 %v917, %v913
        %v1070 = vpack.c.b16 %v918, %v914
        %v1071 = vpack.c.b16 %v923, %v919
        %v1072 = vpack.c.b16 %v924, %v920
        %v1073 = vpack.c.b16 %v925, %v921
        %v1074 = vpack.c.b16 %v926, %v922
        %v1075 = vpack.c.b16 %v931, %v927
        %v1076 = vpack.c.b16 %v932, %v928
        %v1077 = vpack.c.b16 %v933, %v929
        %v1078 = vpack.c.b16 %v934, %v930
        %v1079 = vpack.c.b16 %v939, %v935
        %v1080 = vpack.c.b16 %v940, %v936
        %v1081 = vpack.c.b16 %v941, %v937
        %v1082 = vpack.c.b16 %v942, %v938
        %v1083 = vpack.c.b16 %v947, %v943
        %v1084 = vpack.c.b16 %v948, %v944
        %v1085 = vpack.c.b16 %v949, %v945
        %v1086 = vpack.c.b16 %v950, %v946
        %v1087 = vpack.c.b16 %v955, %v951
        %v1088 = vpack.c.b16 %v956, %v952
        %v1089 = vpack.c.b16 %v957, %v953
        %v1090 = vpack.c.b16 %v958, %v954
        %v1091 = vpack.c.b16 %v963, %v959
        %v1092 = vpack.c.b16 %v964, %v960
        %v1093 = vpack.c.b16 %v965, %v961
        %v1094 = vpack.c.b16 %v966, %v962
        %1223 = vmatprep.subr.bf16.mxu0 %v968
        %1224 = vmatpush1.bf16.msra.mxu0 %v967
        %1225 = vmatprep.subr.bf16.mxu0 %v972
        %1226 = vmatpush1.bf16.msra.mxu0 %v971
        %1227 = vmatprep.subr.bf16.mxu0 %v976
        %1228 = vmatpush1.bf16.msra.mxu0 %v975
        %1229 = vmatprep.subr.bf16.mxu0 %v980
        %1230 = vmatpush1.bf16.msra.mxu0 %v979
        %1231 = vmatprep.subr.bf16.mxu0 %v984
        %1232 = vmatpush1.bf16.msra.mxu0 %v983
        %1233 = vmatprep.subr.bf16.mxu0 %v988
        %1234 = vmatpush1.bf16.msra.mxu0 %v987
        %1235 = vmatprep.subr.bf16.mxu0 %v992
        %1236 = vmatpush1.bf16.msra.mxu0 %v991
        %1237 = vmatprep.subr.bf16.mxu0 %v996
        %1238 = vmatpush1.bf16.msra.mxu0 %v995
        %1239 = vmatprep.subr.bf16.mxu0 %v1000
        %1240 = vmatpush1.bf16.msra.mxu0 %v999
        %1241 = vmatprep.subr.bf16.mxu0 %v1004
        %1242 = vmatpush1.bf16.msra.mxu0 %v1003
        %1243 = vmatprep.subr.bf16.mxu0 %v1008
        %1244 = vmatpush1.bf16.msra.mxu0 %v1007
        %1245 = vmatprep.subr.bf16.mxu0 %v1012
        %1246 = vmatpush1.bf16.msra.mxu0 %v1011
        %1247 = vmatprep.subr.bf16.mxu0 %v1016
        %1248 = vmatpush1.bf16.msra.mxu0 %v1015
        %1249 = vmatprep.subr.bf16.mxu0 %v1020
        %1250 = vmatpush1.bf16.msra.mxu0 %v1019
        %1251 = vmatprep.subr.bf16.mxu0 %v1024
        %1252 = vmatpush1.bf16.msra.mxu0 %v1023
        %1253 = vmatprep.subr.bf16.mxu0 %v1028
        %1254 = vmatpush1.bf16.msra.mxu0 %v1027
        %1255 = vmatprep.mubr.bf16.mxu0 %v452
        %1256 = vmatmul.mubr.bf16.gmra.mrb[0].mxu0 %v451
        %v1257 = vpop.f32.mrb[0].mxu0
        %v1258 = vadd.f32 0.0, %v1257
        %v1259 = vpop.f32.mrb[0].mxu0
        %v1260 = vadd.f32 0.0, %v1259
        %v1261 = vpop.f32.mrb[0].mxu0
        %v1262 = vpop.f32.mrb[0].mxu0
        %1263 = vdwg.mxu0
        %1264 = vmatprep.subr.bf16.mxu0 %v1032
        %1265 = vmatpush1.bf16.msra.mxu0 %v1031
        %1266 = vmatprep.subr.bf16.mxu0 %v1036
        %1267 = vmatpush1.bf16.msra.mxu0 %v1035
        %1268 = vmatprep.subr.bf16.mxu0 %v1040
        %1269 = vmatpush1.bf16.msra.mxu0 %v1039
        %1270 = vmatprep.subr.bf16.mxu0 %v1044
        %1271 = vmatpush1.bf16.msra.mxu0 %v1043
        %1272 = vmatprep.subr.bf16.mxu0 %v1048
        %1273 = vmatpush1.bf16.msra.mxu0 %v1047
        %1274 = vmatprep.subr.bf16.mxu0 %v1052
        %1275 = vmatpush1.bf16.msra.mxu0 %v1051
        %1276 = vmatprep.subr.bf16.mxu0 %v1056
        %1277 = vmatpush1.bf16.msra.mxu0 %v1055
        %1278 = vmatprep.subr.bf16.mxu0 %v1060
        %1279 = vmatpush1.bf16.msra.mxu0 %v1059
        %1280 = vmatprep.subr.bf16.mxu0 %v1064
        %1281 = vmatpush1.bf16.msra.mxu0 %v1063
        %1282 = vmatprep.subr.bf16.mxu0 %v1068
        %1283 = vmatpush1.bf16.msra.mxu0 %v1067
        %1284 = vmatprep.subr.bf16.mxu0 %v1072
        %1285 = vmatpush1.bf16.msra.mxu0 %v1071
        %1286 = vmatprep.subr.bf16.mxu0 %v1076
        %1287 = vmatpush1.bf16.msra.mxu0 %v1075
        %1288 = vmatprep.subr.bf16.mxu0 %v1080
        %1289 = vmatpush1.bf16.msra.mxu0 %v1079
        %1290 = vmatprep.subr.bf16.mxu0 %v1084
        %1291 = vmatpush1.bf16.msra.mxu0 %v1083
        %1292 = vmatprep.subr.bf16.mxu0 %v1088
        %1293 = vmatpush1.bf16.msra.mxu0 %v1087
        %1294 = vmatprep.subr.bf16.mxu0 %v1092
        %1295 = vmatpush1.bf16.msra.mxu0 %v1091
        %1296 = vmatprep.mubr.bf16.mxu0 %v454
        %1297 = vmatmul.mubr.bf16.gmra.mrb[0].mxu0 %v453
        %v1298 = vpop.f32.mrb[0].mxu0
        %v1299 = vadd.f32 %v1258, %v1298
        %v1300 = vpop.f32.mrb[0].mxu0
        %v1301 = vadd.f32 %v1260, %v1300
        %v1302 = vpop.f32.mrb[0].mxu0
        %v1303 = vpop.f32.mrb[0].mxu0
        %1304 = vdwg.mxu0
        %1305 = vmatprep.subr.bf16.mxu0 %v970
        %1306 = vmatpush1.bf16.msra.mxu0 %v969
        %1307 = vmatprep.subr.bf16.mxu0 %v974
        %1308 = vmatpush1.bf16.msra.mxu0 %v973
        %1309 = vmatprep.subr.bf16.mxu0 %v978
        %1310 = vmatpush1.bf16.msra.mxu0 %v977
        %1311 = vmatprep.subr.bf16.mxu0 %v982
        %1312 = vmatpush1.bf16.msra.mxu0 %v981
        %1313 = vmatprep.subr.bf16.mxu0 %v986
        %1314 = vmatpush1.bf16.msra.mxu0 %v985
        %1315 = vmatprep.subr.bf16.mxu0 %v990
        %1316 = vmatpush1.bf16.msra.mxu0 %v989
        %1317 = vmatprep.subr.bf16.mxu0 %v994
        %1318 = vmatpush1.bf16.msra.mxu0 %v993
        %1319 = vmatprep.subr.bf16.mxu0 %v998
        %1320 = vmatpush1.bf16.msra.mxu0 %v997
        %1321 = vmatprep.subr.bf16.mxu0 %v1002
        %1322 = vmatpush1.bf16.msra.mxu0 %v1001
        %1323 = vmatprep.subr.bf16.mxu0 %v1006
        %1324 = vmatpush1.bf16.msra.mxu0 %v1005
        %1325 = vmatprep.subr.bf16.mxu0 %v1010
        %1326 = vmatpush1.bf16.msra.mxu0 %v1009
        %1327 = vmatprep.subr.bf16.mxu0 %v1014
        %1328 = vmatpush1.bf16.msra.mxu0 %v1013
        %1329 = vmatprep.subr.bf16.mxu0 %v1018
        %1330 = vmatpush1.bf16.msra.mxu0 %v1017
        %1331 = vmatprep.subr.bf16.mxu0 %v1022
        %1332 = vmatpush1.bf16.msra.mxu0 %v1021
        %1333 = vmatprep.subr.bf16.mxu0 %v1026
        %1334 = vmatpush1.bf16.msra.mxu0 %v1025
        %1335 = vmatprep.subr.bf16.mxu0 %v1030
        %1336 = vmatpush1.bf16.msra.mxu0 %v1029
        %1337 = vmatprep.mubr.bf16.mxu0 %v452
        %1338 = vmatmul.mubr.bf16.gmra.mrb[0].mxu0 %v451
        %v1339 = vpop.f32.mrb[0].mxu0
        %v1340 = vadd.f32 0.0, %v1339
        %v1341 = vpop.f32.mrb[0].mxu0
        %v1342 = vadd.f32 0.0, %v1341
        %v1343 = vpop.f32.mrb[0].mxu0
        %v1344 = vpop.f32.mrb[0].mxu0
        %1345 = vdwg.mxu0
        %1346 = vmatprep.subr.bf16.mxu0 %v1034
        %1347 = vmatpush1.bf16.msra.mxu0 %v1033
        %1348 = vmatprep.subr.bf16.mxu0 %v1038
        %1349 = vmatpush1.bf16.msra.mxu0 %v1037
        %1350 = vmatprep.subr.bf16.mxu0 %v1042
        %1351 = vmatpush1.bf16.msra.mxu0 %v1041
        %1352 = vmatprep.subr.bf16.mxu0 %v1046
        %1353 = vmatpush1.bf16.msra.mxu0 %v1045
        %1354 = vmatprep.subr.bf16.mxu0 %v1050
        %1355 = vmatpush1.bf16.msra.mxu0 %v1049
        %1356 = vmatprep.subr.bf16.mxu0 %v1054
        %1357 = vmatpush1.bf16.msra.mxu0 %v1053
        %1358 = vmatprep.subr.bf16.mxu0 %v1058
        %1359 = vmatpush1.bf16.msra.mxu0 %v1057
        %1360 = vmatprep.subr.bf16.mxu0 %v1062
        %1361 = vmatpush1.bf16.msra.mxu0 %v1061
        %1362 = vmatprep.subr.bf16.mxu0 %v1066
        %1363 = vmatpush1.bf16.msra.mxu0 %v1065
        %1364 = vmatprep.subr.bf16.mxu0 %v1070
        %1365 = vmatpush1.bf16.msra.mxu0 %v1069
        %1366 = vmatprep.subr.bf16.mxu0 %v1074
        %1367 = vmatpush1.bf16.msra.mxu0 %v1073
        %1368 = vmatprep.subr.bf16.mxu0 %v1078
        %1369 = vmatpush1.bf16.msra.mxu0 %v1077
        %1370 = vmatprep.subr.bf16.mxu0 %v1082
        %1371 = vmatpush1.bf16.msra.mxu0 %v1081
        %1372 = vmatprep.subr.bf16.mxu0 %v1086
        %1373 = vmatpush1.bf16.msra.mxu0 %v1085
        %1374 = vmatprep.subr.bf16.mxu0 %v1090
        %1375 = vmatpush1.bf16.msra.mxu0 %v1089
        %1376 = vmatprep.subr.bf16.mxu0 %v1094
        %1377 = vmatpush1.bf16.msra.mxu0 %v1093
        %1378 = vmatprep.mubr.bf16.mxu0 %v454
        %1379 = vmatmul.mubr.bf16.gmra.mrb[0].mxu0 %v453
        %v1380 = vpop.f32.mrb[0].mxu0
        %v1381 = vadd.f32 %v1340, %v1380
        %v1382 = vpop.f32.mrb[0].mxu0
        %v1383 = vadd.f32 %v1342, %v1382
        %v1384 = vpop.f32.mrb[0].mxu0
        %v1385 = vpop.f32.mrb[0].mxu0
        %1386 = vdwg.mxu0
        %v1387 = vadd.f32 %v447, %v1299
        %v1388 = vadd.f32 %v448, %v1301
        %v1389 = vadd.f32 %v449, %v1381
        %v1390 = vadd.f32 %v450, %v1383
        %1391 = vst [vmem:[#allocation2] sm:$0xff] %v1387
        %1392 = vst [vmem:[#allocation2 + $0x8] sm:$0xff] %v1388
        %1393 = vst [vmem:[#allocation2 + $0x10] sm:$0xff] %v1389
        %1394 = vst [vmem:[#allocation2 + $0x18] sm:$0xff] %v1390
        %p1395 = scmp.eq.s32.totalorder %s33, 1
        // Predicated region
        $region73: #{tpu_custom_call.1} parent=43 // pred_check
          %p1396 = pneg %p1395
        $region74: #{tpu_custom_call.1} parent=43 // pred_check_branch
          %1398 = sbr.rel (%p1396) target = $region76
        $region75: #{tpu_custom_call.1} parent=43 // pred_region
          %v1399 = vld [vmem:[#allocation3] sm:$0xff]
          %v1400 = vld [vmem:[#allocation2] sm:$0xff]
          %v1401 = vld [vmem:[#allocation2 + $0x8] sm:$0xff]
          %v1402 = vld [vmem:[#allocation2 + $0x10] sm:$0xff]
          %v1403 = vld [vmem:[#allocation2 + $0x18] sm:$0xff]
          %v1404 = vld [vmem:[%s350] sm:$0xf]
          %1406 = vset.pattern.permute.xlu0 2
          %1407 = vperm.xlu0 %1406, %v1399
          %v1408 = vpop.permute.xlu0 %1407
          %v1411 = vlaneseq
          %v1412 = vshrl.u32 %v1411, 7
          %v1413 = vsub.s32 0, %v1412
          %v1414 = vrot.slane %v1404, %v1413
          %v1415 = vlaneseq
          %v1416 = vshrl.u32 %v1415, 7
          %v1417 = vsub.s32 1, %v1416
          %v1418 = vrot.slane %v1404, %v1417
          %v1419 = vlaneseq
          %v1420 = vshrl.u32 %v1419, 7
          %v1421 = vsub.s32 2, %v1420
          %v1422 = vrot.slane %v1404, %v1421
          %v1423 = vlaneseq
          %v1424 = vshrl.u32 %v1423, 7
          %v1425 = vsub.s32 3, %v1424
          %v1426 = vrot.slane %v1404, %v1425
          %v1431 = vmul.f32 %v1408, %v1414
          %v1432 = vmul.f32 %v1408, %v1418
          %v1433 = vmul.f32 %v1408, %v1422
          %v1434 = vmul.f32 %v1408, %v1426
          %v1435 = vadd.f32 %v1400, %v1431
          %v1436 = vadd.f32 %v1401, %v1432
          %v1437 = vadd.f32 %v1402, %v1433
          %v1438 = vadd.f32 %v1403, %v1434
          %v1439 = vsub.f32 1.0, %v1399
          %v1440 = vld [vmem:[%s359] sm:$0xff]
          %v1441 = vld [vmem:[%s359 + $0x8] sm:$0xff]
          %v1442 = vld [vmem:[%s359 + $0x10] sm:$0xff]
          %v1443 = vld [vmem:[%s359 + $0x18] sm:$0xff]
          %1445 = vset.pattern.permute.xlu0 3
          %1446 = vperm.xlu0 %1445, %v1439
          %v1447 = vpop.permute.xlu0 %1446
          %v1449 = vmul.f32 %v1447, %v1440
          %v1450 = vmul.f32 %v1447, %v1441
          %v1451 = vmul.f32 %v1447, %v1442
          %v1452 = vmul.f32 %v1447, %v1443
          %v1453 = vadd.f32 %v1435, %v1449
          %v1454 = vadd.f32 %v1436, %v1450
          %v1455 = vadd.f32 %v1437, %v1451
          %v1456 = vadd.f32 %v1438, %v1452
          %s1457 = smul.u32 %s32, 512
          %s1458 = sshra.s32 %s1457, 7
          %s1459 = sand.u32 %s1457, 127
          %s1460 = smul.addr %s1458, 8
          %s1461 = scalar_lea.vmem [#allocation8], %s1460
          %v1462 = vld [vmem:[%s1461] sm:$0xff]
          %v1463 = vld [vmem:[%s1461 + $0x8] sm:$0xff]
          %v1464 = vld [vmem:[%s1461 + $0x10] sm:$0xff]
          %v1465 = vld [vmem:[%s1461 + $0x18] sm:$0xff]
          %v1466 = vsub.f32 %v1462, %v1453
          %v1467 = vsub.f32 %v1463, %v1454
          %v1468 = vsub.f32 %v1464, %v1455
          %v1469 = vsub.f32 %v1465, %v1456
          %v1470 = vmul.f32 %v1466, %v1466
          %v1471 = vmul.f32 %v1467, %v1467
          %v1472 = vmul.f32 %v1468, %v1468
          %v1473 = vmul.f32 %v1469, %v1469
          %v1474 = vadd.f32 %v1470, %v1471
          %v1475 = vadd.f32 %v1474, %v1472
          %v1476 = vadd.f32 %v1475, %v1473
          %1477 = vadd.xlane.f32.xlu0 %v1476
          %v1478 = vpop.xlane.xlu0 %1477
          %v1479 = vrot.slane %v1478, 4
          %v1480 = vadd.f32 %v1478, %v1479
          %v1481 = vrot.slane %v1480, 2
          %v1482 = vadd.f32 %v1480, %v1481
          %v1483 = vrot.slane %v1482, 1
          %v1484 = vadd.f32 %v1482, %v1483
          %s1485 = vtos %v1484
          %s1486 = smul.f32 %s1485, 0.0009765625
          %v1487 = vstv %s1486
          %1488 = vst [vmem:[%s397] sm:$0xff] %v1487
        $region76: #{tpu_custom_call.1} parent=43 // pred_fallthru
          _
        %s1489 = sand.u32 %s191, 1
        %s1490 = scalar_lea.sflag [#allocation5], %s1489
        %s1491 = sand.u32 %s191, 1
        %s1492 = smul.addr %s1491, 8
        %s1493 = scalar_lea.vmem [#allocation14], %s1492
        // Predicated region
        $region77: #{tpu_custom_call.1} parent=43 // pred_check
          %p1494 = pneg %p201
        $region78: #{tpu_custom_call.1} parent=43 // pred_check_branch
          %1496 = sbr.rel (%p1494) target = $region80
        $region79: #{tpu_custom_call.1} parent=43 // pred_region
          %s1498 = ssub.s32 128, 128
          %1499 = vsyncadd %s1490, %s1498
          %s1500 = smul.addr %s32, 128
          %s1501 = scalar_lea.hbm %s6, %s1500
          %s1503 = sshll.u32 %s1493, 4
          %s1504 = int_to_ptr.vmem [resolvable:$true] %s1503
          %1506 = dma.vmem_to_hbm [thread:$0]  %s1504, 128, %s1501, %s1490
        $region80: #{tpu_custom_call.1} parent=43 // pred_fallthru
          _
      $region44: #{tpu_custom_call.1} parent=5 // pred_fallthru
        _
      %p1507 = scmp.le.s32.totalorder 2, %s23
      // Predicated region
      $region81: #{tpu_custom_call.1} parent=5 // pred_check
        %p1508 = pneg %p1507
      $region82: #{tpu_custom_call.1} parent=5 // pred_check_branch
        %1510 = sbr.rel (%p1508) target = $region84
      $region83: #{tpu_custom_call.1} parent=5 // pred_region
        %s1511 = ssub.s32 %s23, 2
        // Predicated region
        $region85: #{tpu_custom_call.1} parent=83 // pred_check
          %p1512 = pneg %p207
        $region86: #{tpu_custom_call.1} parent=83 // pred_check_branch
          %1514 = sbr.rel (%p1512) target = $region88
        $region87: #{tpu_custom_call.1} parent=83 // pred_region
          %s1515 = sand.u32 %s192, 1
          %s1516 = scalar_lea.sflag [#allocation5], %s1515
          %s1517 = sand.u32 %s192, 1
          %s1518 = smul.addr %s1517, 8
          %s1519 = scalar_lea.vmem [#allocation14], %s1518
          %1520 = dma.done %s1516, 128
        $region88: #{tpu_custom_call.1} parent=83 // pred_fallthru
          _
      $region84: #{tpu_custom_call.1} parent=5 // pred_fallthru
        _
    $region6: #{tpu_custom_call.1} parent=1 // loop_footer
      %s27 = sadd.s32 1, %s23
    $region7: #{tpu_custom_call.1} parent=1 // loop_footer_branch
      %22 = sbr.rel target = $region3
    $region8: #{tpu_custom_call.1} parent=1 // loop_exit
      _
    %1521 = vsyncpa [#allocation4], 1
    %s1522 = scalar_lea.sflag [#allocation4], 1
    %1523 = vsyncpa %s1522, 1
    %1524 = vsyncpa [#allocation7], 1
    %1525 = vsyncpa [#allocation10], 1
    %s1526 = scalar_lea.sflag [#allocation10], 1
    %1527 = vsyncpa %s1526, 1
    %1528 = vsyncpa [#allocation13], 1
    %s1529 = scalar_lea.sflag [#allocation13], 1
    %1530 = vsyncpa %s1529, 1
    %1531 = vsyncpa [#allocation5], 1
    %s1532 = scalar_lea.sflag [#allocation5], 1
    %1533 = vsyncpa %s1532, 1

</llo_original>
